<compile_context>
chip_gen: v6e
topology: v6e:2x2x1
jax: 0.10.0
libtpu: 0.0.40
codegen_flags: <defaults>
</compile_context>

<pallas_src>
import jax
import jax.numpy as jnp
from jax.experimental import pallas as pl
from jax.experimental.pallas import tpu as pltpu


def _forward_sage_block_kernel(x_ref, a_ref, w_in_ref, w_mid_ref, b_ref, bn_ref,
                               o_ref):
    # x_ref: (B_blk, N, F)   a_ref: (B_blk, N, N)   o_ref: (B_blk, N, C)
    # w_in_ref:  (4, F, C)  rows = [w1_rel, w1_root, wr_rel, wr_root]
    # w_mid_ref: (3, C, C)  rows = [wl, w2_rel, w2_root]
    # b_ref:     (4, 1, C)  rows = [b1, bl, b2, br]
    # bn_ref:    (4, N, 1)  rows = [bn1_scale, bn1_shift, bn2_scale, bn2_shift]
    Bb, N, F = x_ref.shape
    C = o_ref.shape[-1]
    M = Bb * N  # flattened (batch*node) rows for all weight matmuls

    x = x_ref[...]                                          # (Bb, N, F)
    a = a_ref[...]                                          # (Bb, N, N)

    # Unpack parameter slabs (leading-axis indexing only).
    w1_rel, w1_root = w_in_ref[0], w_in_ref[1]
    wr_rel, wr_root = w_in_ref[2], w_in_ref[3]
    wl, w2_rel, w2_root = w_mid_ref[0], w_mid_ref[1], w_mid_ref[2]
    b1, bl, b2, br = b_ref[0], b_ref[1], b_ref[2], b_ref[3]
    bn1_scale, bn1_shift = bn_ref[0], bn_ref[1]
    bn2_scale, bn2_shift = bn_ref[2], bn_ref[3]

    # Mean aggregation: one reciprocal (EUP) + multiplies instead of divides.
    deg_inv = pl.reciprocal(jnp.maximum(jnp.sum(a, axis=-1, keepdims=True), 1.0))
    ax = jnp.einsum('bnm,bmf->bnf', a, x,
                    preferred_element_type=jnp.float32) * deg_inv   # (Bb, N, F)

    # Flatten batch*node for the batch-independent weight matmuls.
    # (N is a multiple of 8 so this reshape is layout-preserving.)
    x_flat = x.reshape(M, F)
    ax_flat = ax.reshape(M, F)

    # sage1 + relu
    h = jnp.maximum(
        jnp.dot(ax_flat, w1_rel, preferred_element_type=jnp.float32)
        + jnp.dot(x_flat, w1_root, preferred_element_type=jnp.float32)
        + b1, 0.0)                                           # (M, C)

    # lin
    h = jnp.dot(h, wl, preferred_element_type=jnp.float32) + bl

    # bn1 (eval): per-node scale/shift, broadcast across batch and feature dims
    h3 = h.reshape(Bb, N, C) * bn1_scale + bn1_shift

    # dropout -> identity (inference)

    # sage2 + relu
    ah = jnp.einsum('bnm,bmc->bnc', a, h3,
                    preferred_element_type=jnp.float32) * deg_inv   # (Bb, N, C)
    h2 = jnp.maximum(
        jnp.dot(ah.reshape(M, C), w2_rel, preferred_element_type=jnp.float32)
        + jnp.dot(h3.reshape(M, C), w2_root, preferred_element_type=jnp.float32)
        + b2, 0.0)
    h2 = h2.reshape(Bb, N, C) * bn2_scale + bn2_shift

    # residual SAGE on the original X (shares ax)
    res = (jnp.dot(ax_flat, wr_rel, preferred_element_type=jnp.float32)
           + jnp.dot(x_flat, wr_root, preferred_element_type=jnp.float32)
           + br)

    o_ref[...] = (h2 + res.reshape(Bb, N, C)).astype(o_ref.dtype)


def forward_sage_block(x, a, params, *, num_chunks=2):
    B, N, F_in = x.shape
    C = params["w1_rel"].shape[1]

    # Batch chunking: keep >=2 grid steps when possible so both v7x TensorCores
    # are used, but give each step a whole chunk of graphs (not one).
    num_chunks = max(1, min(num_chunks, B))
    b_blk = pl.cdiv(B, num_chunks)
    B_pad = b_blk * num_chunks
    if B_pad != B:
        pad = B_pad - B
        x = jnp.pad(x, ((0, pad), (0, 0), (0, 0)))
        a = jnp.pad(a, ((0, pad), (0, 0), (0, 0)))

    # Pack the 15 small parameter arrays into 4 stacked slabs (host side).
    w_in = jnp.stack([params["w1_rel"], params["w1_root"],
                      params["wr_rel"], params["wr_root"]])          # (4, F, C)
    w_mid = jnp.stack([params["wl"], params["w2_rel"], params["w2_root"]])  # (3, C, C)
    biases = jnp.stack([params["b1"], params["bl"],
                        params["b2"], params["br"]])                 # (4, 1, C)
    bn = jnp.stack([params["bn1_scale"], params["bn1_shift"],
                    params["bn2_scale"], params["bn2_shift"]])       # (4, N, 1)

    # Advisory cost estimate (tiny kernel; helps XLA not over-serialize).
    flops = B_pad * (2 * N * N * F_in + 2 * N * N * C
                     + 4 * 2 * N * F_in * C + 3 * 2 * N * C * C)
    bytes_accessed = 4 * (x.size + a.size + B_pad * N * C
                          + w_in.size + w_mid.size + biases.size + bn.size)

    def bcast(shape):
        return pl.BlockSpec(shape, lambda g: (0,) * len(shape))

    # NOTE: for large N the (b_blk, N, N) adjacency block is the VMEM driver
    # (double-buffered, 8*b_blk*N^2 bytes); on v7x (32 MiB default scoped VMEM)
    # tile the aggregation over neighbor chunks or raise vmem_limit_bytes.
    out = pl.pallas_call(
        _forward_sage_block_kernel,
        out_shape=jax.ShapeDtypeStruct((B_pad, N, C), jnp.float32),
        grid_spec=pltpu.PrefetchScalarGridSpec(
            num_scalar_prefetch=0,
            grid=(num_chunks,),
            in_specs=[
                pl.BlockSpec((b_blk, N, F_in), lambda g: (g, 0, 0)),   # X chunk
                pl.BlockSpec((b_blk, N, N),    lambda g: (g, 0, 0)),   # A chunk
                bcast((4, F_in, C)),                                   # w_in slab
                bcast((3, C, C)),                                      # w_mid slab
                bcast((4, 1, C)),                                      # bias slab
                bcast((4, N, 1)),                                      # bn slab
            ],
            out_specs=pl.BlockSpec((b_blk, N, C), lambda g: (g, 0, 0)),
        ),
        compiler_params=pltpu.CompilerParams(
            dimension_semantics=("parallel",)),
        cost_estimate=pl.CostEstimate(flops=flops, transcendentals=0,
                                      bytes_accessed=bytes_accessed),
    )(x, a, w_in, w_mid, biases, bn)
    return out[:B]


def ref_forward(x, a, p):
    """Pure-JAX reference (same eval-mode semantics)."""
    deg = jnp.maximum(a.sum(-1, keepdims=True), 1.0)
    ax = (a @ x) / deg
    h = jax.nn.relu(ax @ p["w1_rel"] + x @ p["w1_root"] + p["b1"])
    h = h @ p["wl"] + p["bl"]
    h = h * p["bn1_scale"][None] + p["bn1_shift"][None]
    ah = (a @ h) / deg
    h2 = jax.nn.relu(ah @ p["w2_rel"] + h @ p["w2_root"] + p["b2"])
    h2 = h2 * p["bn2_scale"][None] + p["bn2_shift"][None]
    res = ax @ p["wr_rel"] + x @ p["wr_root"] + p["br"]
    return h2 + res


def make_params(key, in_c, out_c, num_ft, eps=1e-5):
    ks = jax.random.split(key, 19)
    nrm = lambda k, shape, s=0.2: (s * jax.random.normal(k, shape)).astype(jnp.float32)

    def bn_affine(k_gamma, k_beta, k_rm, k_rv, n):
        gamma = 1.0 + 0.1 * jax.random.normal(k_gamma, (n,))
        beta = 0.1 * jax.random.normal(k_beta, (n,))
        running_mean = 0.1 * jax.random.normal(k_rm, (n,))
        running_var = 1.0 + 0.1 * jax.random.uniform(k_rv, (n,))
        scale = gamma / jnp.sqrt(running_var + eps)
        shift = beta - running_mean * scale
        return (scale.reshape(n, 1).astype(jnp.float32),
                shift.reshape(n, 1).astype(jnp.float32))

    bn1_scale, bn1_shift = bn_affine(ks[11], ks[12], ks[13], ks[14], num_ft)
    bn2_scale, bn2_shift = bn_affine(ks[15], ks[16], ks[17], ks[18], num_ft)

    # Linear weights stored pre-transposed as (in, out) so the kernel does x @ W.
    return {
        "w1_rel": nrm(ks[0], (in_c, out_c)),
        "w1_root": nrm(ks[1], (in_c, out_c)),
        "b1": nrm(ks[2], (1, out_c)),
        "wl": nrm(ks[3], (out_c, out_c)),
        "bl": nrm(ks[4], (1, out_c)),
        "w2_rel": nrm(ks[5], (out_c, out_c)),
        "w2_root": nrm(ks[6], (out_c, out_c)),
        "b2": nrm(ks[7], (1, out_c)),
        "wr_rel": nrm(ks[8], (in_c, out_c)),
        "wr_root": nrm(ks[9], (in_c, out_c)),
        "br": nrm(ks[10], (1, out_c)),
        "bn1_scale": bn1_scale, "bn1_shift": bn1_shift,
        "bn2_scale": bn2_scale, "bn2_shift": bn2_shift,
    }


if __name__ == "__main__":
    B, num_ft, in_c, out_c = 4, 8, 4, 32   # num_ft == number of nodes N

    key = jax.random.PRNGKey(0)
    kx, ka, kp = jax.random.split(key, 3)

    x = jax.random.normal(kx, (B, num_ft, in_c), dtype=jnp.float32)
    # dense adjacency: random 0/1 edges + self loops
    a = (jax.random.uniform(ka, (B, num_ft, num_ft)) < 0.4).astype(jnp.float32)
    a = jnp.maximum(a, jnp.eye(num_ft, dtype=jnp.float32)[None])

    params = make_params(kp, in_c, out_c, num_ft)

    out = forward_sage_block(x, a, params, num_chunks=2)
    out = jax.block_until_ready(out)

    ref = ref_forward(x, a, params)
    assert out.shape == (B, num_ft, out_c)
    assert jnp.allclose(out, ref, rtol=1e-5, atol=1e-5), (
        float(jnp.max(jnp.abs(out - ref))))

    print("KERNEL_OK")
</pallas_src>

<mosaic_0001>
module attributes {stable_mosaic.version = 11 : i64} {
  func.func @_forward_sage_block_kernel(%arg0: i32, %arg1: memref<2x8x4xf32, #tpu.memory_space<vmem>>, %arg2: memref<2x8x8xf32, #tpu.memory_space<vmem>>, %arg3: memref<4x4x32xf32, #tpu.memory_space<vmem>>, %arg4: memref<3x32x32xf32, #tpu.memory_space<vmem>>, %arg5: memref<4x1x32xf32, #tpu.memory_space<vmem>>, %arg6: memref<4x8x1xf32, #tpu.memory_space<vmem>>, %arg7: memref<2x8x32xf32, #tpu.memory_space<vmem>>) attributes {dimension_semantics = [#tpu.dimension_semantics<parallel>], iteration_bounds = array<i64: 2>, scalar_prefetch = 0 : i64, scratch_operands = 0 : i64, tpu.core_type = #tpu.core_type<tc>, window_params = [{transform_indices = @transform_0, window_bounds = array<i64: 2, 8, 4>}, {transform_indices = @transform_1, window_bounds = array<i64: 2, 8, 8>}, {pipeline_mode = #tpu.pipeline_mode<synchronous>, transform_indices = @transform_2, window_bounds = array<i64: 4, 4, 32>}, {pipeline_mode = #tpu.pipeline_mode<synchronous>, transform_indices = @transform_3, window_bounds = array<i64: 3, 32, 32>}, {pipeline_mode = #tpu.pipeline_mode<synchronous>, transform_indices = @transform_4, window_bounds = array<i64: 4, 1, 32>}, {pipeline_mode = #tpu.pipeline_mode<synchronous>, transform_indices = @transform_5, window_bounds = array<i64: 4, 8, 1>}, {transform_indices = @transform_6, window_bounds = array<i64: 2, 8, 32>}]} {
    %c0 = arith.constant 0 : index
    %c0_0 = arith.constant 0 : index
    %c0_1 = arith.constant 0 : index
    %0 = vector.load %arg1[%c0, %c0_0, %c0_1] : memref<2x8x4xf32, #tpu.memory_space<vmem>>, vector<2x8x4xf32>
    %c0_2 = arith.constant 0 : index
    %c0_3 = arith.constant 0 : index
    %c0_4 = arith.constant 0 : index
    %1 = vector.load %arg2[%c0_2, %c0_3, %c0_4] : memref<2x8x8xf32, #tpu.memory_space<vmem>>, vector<2x8x8xf32>
    %c0_5 = arith.constant 0 : index
    %c0_6 = arith.constant 0 : index
    %c0_7 = arith.constant 0 : index
    %2 = vector.load %arg3[%c0_5, %c0_6, %c0_7] : memref<4x4x32xf32, #tpu.memory_space<vmem>>, vector<1x4x32xf32>
    %3 = vector.shape_cast %2 : vector<1x4x32xf32> to vector<4x32xf32>
    %c1 = arith.constant 1 : index
    %c0_8 = arith.constant 0 : index
    %c0_9 = arith.constant 0 : index
    %4 = vector.load %arg3[%c1, %c0_8, %c0_9] : memref<4x4x32xf32, #tpu.memory_space<vmem>>, vector<1x4x32xf32>
    %5 = vector.shape_cast %4 : vector<1x4x32xf32> to vector<4x32xf32>
    %c2 = arith.constant 2 : index
    %c0_10 = arith.constant 0 : index
    %c0_11 = arith.constant 0 : index
    %6 = vector.load %arg3[%c2, %c0_10, %c0_11] : memref<4x4x32xf32, #tpu.memory_space<vmem>>, vector<1x4x32xf32>
    %7 = vector.shape_cast %6 : vector<1x4x32xf32> to vector<4x32xf32>
    %c3 = arith.constant 3 : index
    %c0_12 = arith.constant 0 : index
    %c0_13 = arith.constant 0 : index
    %8 = vector.load %arg3[%c3, %c0_12, %c0_13] : memref<4x4x32xf32, #tpu.memory_space<vmem>>, vector<1x4x32xf32>
    %9 = vector.shape_cast %8 : vector<1x4x32xf32> to vector<4x32xf32>
    %c0_14 = arith.constant 0 : index
    %c0_15 = arith.constant 0 : index
    %c0_16 = arith.constant 0 : index
    %10 = vector.load %arg4[%c0_14, %c0_15, %c0_16] : memref<3x32x32xf32, #tpu.memory_space<vmem>>, vector<1x32x32xf32>
    %11 = vector.shape_cast %10 : vector<1x32x32xf32> to vector<32x32xf32>
    %c1_17 = arith.constant 1 : index
    %c0_18 = arith.constant 0 : index
    %c0_19 = arith.constant 0 : index
    %12 = vector.load %arg4[%c1_17, %c0_18, %c0_19] : memref<3x32x32xf32, #tpu.memory_space<vmem>>, vector<1x32x32xf32>
    %13 = vector.shape_cast %12 : vector<1x32x32xf32> to vector<32x32xf32>
    %c2_20 = arith.constant 2 : index
    %c0_21 = arith.constant 0 : index
    %c0_22 = arith.constant 0 : index
    %14 = vector.load %arg4[%c2_20, %c0_21, %c0_22] : memref<3x32x32xf32, #tpu.memory_space<vmem>>, vector<1x32x32xf32>
    %15 = vector.shape_cast %14 : vector<1x32x32xf32> to vector<32x32xf32>
    %c0_23 = arith.constant 0 : index
    %c0_24 = arith.constant 0 : index
    %c0_25 = arith.constant 0 : index
    %16 = vector.load %arg5[%c0_23, %c0_24, %c0_25] : memref<4x1x32xf32, #tpu.memory_space<vmem>>, vector<1x1x32xf32>
    %17 = vector.shape_cast %16 : vector<1x1x32xf32> to vector<1x32xf32>
    %c1_26 = arith.constant 1 : index
    %c0_27 = arith.constant 0 : index
    %c0_28 = arith.constant 0 : index
    %18 = vector.load %arg5[%c1_26, %c0_27, %c0_28] : memref<4x1x32xf32, #tpu.memory_space<vmem>>, vector<1x1x32xf32>
    %19 = vector.shape_cast %18 : vector<1x1x32xf32> to vector<1x32xf32>
    %c2_29 = arith.constant 2 : index
    %c0_30 = arith.constant 0 : index
    %c0_31 = arith.constant 0 : index
    %20 = vector.load %arg5[%c2_29, %c0_30, %c0_31] : memref<4x1x32xf32, #tpu.memory_space<vmem>>, vector<1x1x32xf32>
    %21 = vector.shape_cast %20 : vector<1x1x32xf32> to vector<1x32xf32>
    %c3_32 = arith.constant 3 : index
    %c0_33 = arith.constant 0 : index
    %c0_34 = arith.constant 0 : index
    %22 = vector.load %arg5[%c3_32, %c0_33, %c0_34] : memref<4x1x32xf32, #tpu.memory_space<vmem>>, vector<1x1x32xf32>
    %23 = vector.shape_cast %22 : vector<1x1x32xf32> to vector<1x32xf32>
    %c0_35 = arith.constant 0 : index
    %c0_36 = arith.constant 0 : index
    %c0_37 = arith.constant 0 : index
    %24 = vector.load %arg6[%c0_35, %c0_36, %c0_37] : memref<4x8x1xf32, #tpu.memory_space<vmem>>, vector<1x8x1xf32>
    %25 = vector.shape_cast %24 : vector<1x8x1xf32> to vector<8x1xf32>
    %c1_38 = arith.constant 1 : index
    %c0_39 = arith.constant 0 : index
    %c0_40 = arith.constant 0 : index
    %26 = vector.load %arg6[%c1_38, %c0_39, %c0_40] : memref<4x8x1xf32, #tpu.memory_space<vmem>>, vector<1x8x1xf32>
    %27 = vector.shape_cast %26 : vector<1x8x1xf32> to vector<8x1xf32>
    %c2_41 = arith.constant 2 : index
    %c0_42 = arith.constant 0 : index
    %c0_43 = arith.constant 0 : index
    %28 = vector.load %arg6[%c2_41, %c0_42, %c0_43] : memref<4x8x1xf32, #tpu.memory_space<vmem>>, vector<1x8x1xf32>
    %29 = vector.shape_cast %28 : vector<1x8x1xf32> to vector<8x1xf32>
    %c3_44 = arith.constant 3 : index
    %c0_45 = arith.constant 0 : index
    %c0_46 = arith.constant 0 : index
    %30 = vector.load %arg6[%c3_44, %c0_45, %c0_46] : memref<4x8x1xf32, #tpu.memory_space<vmem>>, vector<1x8x1xf32>
    %31 = vector.shape_cast %30 : vector<1x8x1xf32> to vector<8x1xf32>
    %cst = arith.constant dense<0.000000e+00> : vector<2x8xf32>
    %32 = vector.multi_reduction <add>, %1, %cst [2] : vector<2x8x8xf32> to vector<2x8xf32>
    %33 = vector.shape_cast %32 : vector<2x8xf32> to vector<2x8x1xf32>
    %cst_47 = arith.constant 1.000000e+00 : f32
    %34 = vector.broadcast %cst_47 : f32 to vector<2x8x1xf32>
    %35 = arith.maximumf %33, %34 : vector<2x8x1xf32>
    %36 = tpu.reciprocal %35 : vector<2x8x1xf32> -> vector<2x8x1xf32>
    "tpu.trace_start"() <{level = 10 : i32, message = "bnm,bmf->bnf"}> : () -> ()
    %cst_48 = arith.constant dense<0.000000e+00> : vector<2x8x4xf32>
    %37 = tpu.matmul %1, %0, %cst_48 {dimension_numbers = #tpu.dot_dimension_numbers<[2], [1], [1], [2], [0, 0, 0, 1, 1, 2], [0], [0]>} : vector<2x8x8xf32>, vector<2x8x4xf32>, vector<2x8x4xf32> -> vector<2x8x4xf32>
    "tpu.trace_stop"() : () -> ()
    %38 = vector.broadcast %36 : vector<2x8x1xf32> to vector<2x8x4xf32>
    %39 = arith.mulf %37, %38 : vector<2x8x4xf32>
    %40 = vector.shape_cast %0 : vector<2x8x4xf32> to vector<16x4xf32>
    %41 = vector.shape_cast %39 : vector<2x8x4xf32> to vector<16x4xf32>
    %cst_49 = arith.constant dense<0.000000e+00> : vector<16x32xf32>
    %42 = tpu.matmul %41, %3, %cst_49 {dimension_numbers = #tpu.dot_dimension_numbers<[1], [0], [0], [1], [0, 0, 1, 1], [], []>} : vector<16x4xf32>, vector<4x32xf32>, vector<16x32xf32> -> vector<16x32xf32>
    %cst_50 = arith.constant dense<0.000000e+00> : vector<16x32xf32>
    %43 = tpu.matmul %40, %5, %cst_50 {dimension_numbers = #tpu.dot_dimension_numbers<[1], [0], [0], [1], [0, 0, 1, 1], [], []>} : vector<16x4xf32>, vector<4x32xf32>, vector<16x32xf32> -> vector<16x32xf32>
    %44 = arith.addf %42, %43 : vector<16x32xf32>
    %45 = vector.broadcast %17 : vector<1x32xf32> to vector<16x32xf32>
    %46 = arith.addf %44, %45 : vector<16x32xf32>
    %cst_51 = arith.constant 0.000000e+00 : f32
    %47 = vector.broadcast %cst_51 : f32 to vector<16x32xf32>
    %48 = arith.maximumf %46, %47 : vector<16x32xf32>
    %cst_52 = arith.constant dense<0.000000e+00> : vector<16x32xf32>
    %49 = tpu.matmul %48, %11, %cst_52 {dimension_numbers = #tpu.dot_dimension_numbers<[1], [0], [0], [1], [0, 0, 1, 1], [], []>} : vector<16x32xf32>, vector<32x32xf32>, vector<16x32xf32> -> vector<16x32xf32>
    %50 = vector.broadcast %19 : vector<1x32xf32> to vector<16x32xf32>
    %51 = arith.addf %49, %50 : vector<16x32xf32>
    %52 = vector.shape_cast %51 : vector<16x32xf32> to vector<2x8x32xf32>
    %53 = vector.shape_cast %25 : vector<8x1xf32> to vector<1x8x1xf32>
    %54 = vector.broadcast %53 : vector<1x8x1xf32> to vector<2x8x32xf32>
    %55 = arith.mulf %52, %54 : vector<2x8x32xf32>
    %56 = vector.shape_cast %27 : vector<8x1xf32> to vector<1x8x1xf32>
    %57 = vector.broadcast %56 : vector<1x8x1xf32> to vector<2x8x32xf32>
    %58 = arith.addf %55, %57 : vector<2x8x32xf32>
    "tpu.trace_start"() <{level = 10 : i32, message = "bnm,bmc->bnc"}> : () -> ()
    %cst_53 = arith.constant dense<0.000000e+00> : vector<2x8x32xf32>
    %59 = tpu.matmul %1, %58, %cst_53 {dimension_numbers = #tpu.dot_dimension_numbers<[2], [1], [1], [2], [0, 0, 0, 1, 1, 2], [0], [0]>} : vector<2x8x8xf32>, vector<2x8x32xf32>, vector<2x8x32xf32> -> vector<2x8x32xf32>
    "tpu.trace_stop"() : () -> ()
    %60 = vector.broadcast %36 : vector<2x8x1xf32> to vector<2x8x32xf32>
    %61 = arith.mulf %59, %60 : vector<2x8x32xf32>
    %62 = vector.shape_cast %61 : vector<2x8x32xf32> to vector<16x32xf32>
    %cst_54 = arith.constant dense<0.000000e+00> : vector<16x32xf32>
    %63 = tpu.matmul %62, %13, %cst_54 {dimension_numbers = #tpu.dot_dimension_numbers<[1], [0], [0], [1], [0, 0, 1, 1], [], []>} : vector<16x32xf32>, vector<32x32xf32>, vector<16x32xf32> -> vector<16x32xf32>
    %64 = vector.shape_cast %58 : vector<2x8x32xf32> to vector<16x32xf32>
    %cst_55 = arith.constant dense<0.000000e+00> : vector<16x32xf32>
    %65 = tpu.matmul %64, %15, %cst_55 {dimension_numbers = #tpu.dot_dimension_numbers<[1], [0], [0], [1], [0, 0, 1, 1], [], []>} : vector<16x32xf32>, vector<32x32xf32>, vector<16x32xf32> -> vector<16x32xf32>
    %66 = arith.addf %63, %65 : vector<16x32xf32>
    %67 = vector.broadcast %21 : vector<1x32xf32> to vector<16x32xf32>
    %68 = arith.addf %66, %67 : vector<16x32xf32>
    %cst_56 = arith.constant 0.000000e+00 : f32
    %69 = vector.broadcast %cst_56 : f32 to vector<16x32xf32>
    %70 = arith.maximumf %68, %69 : vector<16x32xf32>
    %71 = vector.shape_cast %70 : vector<16x32xf32> to vector<2x8x32xf32>
    %72 = vector.shape_cast %29 : vector<8x1xf32> to vector<1x8x1xf32>
    %73 = vector.broadcast %72 : vector<1x8x1xf32> to vector<2x8x32xf32>
    %74 = arith.mulf %71, %73 : vector<2x8x32xf32>
    %75 = vector.shape_cast %31 : vector<8x1xf32> to vector<1x8x1xf32>
    %76 = vector.broadcast %75 : vector<1x8x1xf32> to vector<2x8x32xf32>
    %77 = arith.addf %74, %76 : vector<2x8x32xf32>
    %cst_57 = arith.constant dense<0.000000e+00> : vector<16x32xf32>
    %78 = tpu.matmul %41, %7, %cst_57 {dimension_numbers = #tpu.dot_dimension_numbers<[1], [0], [0], [1], [0, 0, 1, 1], [], []>} : vector<16x4xf32>, vector<4x32xf32>, vector<16x32xf32> -> vector<16x32xf32>
    %cst_58 = arith.constant dense<0.000000e+00> : vector<16x32xf32>
    %79 = tpu.matmul %40, %9, %cst_58 {dimension_numbers = #tpu.dot_dimension_numbers<[1], [0], [0], [1], [0, 0, 1, 1], [], []>} : vector<16x4xf32>, vector<4x32xf32>, vector<16x32xf32> -> vector<16x32xf32>
    %80 = arith.addf %78, %79 : vector<16x32xf32>
    %81 = vector.broadcast %23 : vector<1x32xf32> to vector<16x32xf32>
    %82 = arith.addf %80, %81 : vector<16x32xf32>
    %83 = vector.shape_cast %82 : vector<16x32xf32> to vector<2x8x32xf32>
    %84 = arith.addf %77, %83 : vector<2x8x32xf32>
    %c0_59 = arith.constant 0 : index
    %c0_60 = arith.constant 0 : index
    %c0_61 = arith.constant 0 : index
    %85 = vector.load %arg7[%c0_59, %c0_60, %c0_61] : memref<2x8x32xf32, #tpu.memory_space<vmem>>, vector<2x8x32xf32>
    tpu.vector_store %arg7[%c0_59, %c0_60, %c0_61], %84 {strides = array<i32>} : memref<2x8x32xf32, #tpu.memory_space<vmem>>, vector<2x8x32xf32>,
    return
  }
  func.func @transform_0(%arg0: i32) -> (i32, i32, i32) {
    %c0_i32 = arith.constant 0 : i32
    %c0_i32_0 = arith.constant 0 : i32
    %c0_i32_1 = arith.constant 0 : i32
    return %arg0, %c0_i32, %c0_i32_0 : i32, i32, i32
  }
  func.func @transform_1(%arg0: i32) -> (i32, i32, i32) {
    %c0_i32 = arith.constant 0 : i32
    %c0_i32_0 = arith.constant 0 : i32
    %c0_i32_1 = arith.constant 0 : i32
    return %arg0, %c0_i32, %c0_i32_0 : i32, i32, i32
  }
  func.func @transform_2(%arg0: i32) -> (i32, i32, i32) {
    %c0_i32 = arith.constant 0 : i32
    %c0_i32_0 = arith.constant 0 : i32
    %c0_i32_1 = arith.constant 0 : i32
    %c0_i32_2 = arith.constant 0 : i32
    return %c0_i32, %c0_i32_0, %c0_i32_1 : i32, i32, i32
  }
  func.func @transform_3(%arg0: i32) -> (i32, i32, i32) {
    %c0_i32 = arith.constant 0 : i32
    %c0_i32_0 = arith.constant 0 : i32
    %c0_i32_1 = arith.constant 0 : i32
    %c0_i32_2 = arith.constant 0 : i32
    return %c0_i32, %c0_i32_0, %c0_i32_1 : i32, i32, i32
  }
  func.func @transform_4(%arg0: i32) -> (i32, i32, i32) {
    %c0_i32 = arith.constant 0 : i32
    %c0_i32_0 = arith.constant 0 : i32
    %c0_i32_1 = arith.constant 0 : i32
    %c0_i32_2 = arith.constant 0 : i32
    return %c0_i32, %c0_i32_0, %c0_i32_1 : i32, i32, i32
  }
  func.func @transform_5(%arg0: i32) -> (i32, i32, i32) {
    %c0_i32 = arith.constant 0 : i32
    %c0_i32_0 = arith.constant 0 : i32
    %c0_i32_1 = arith.constant 0 : i32
    %c0_i32_2 = arith.constant 0 : i32
    return %c0_i32, %c0_i32_0, %c0_i32_1 : i32, i32, i32
  }
  func.func @transform_6(%arg0: i32) -> (i32, i32, i32) {
    %c0_i32 = arith.constant 0 : i32
    %c0_i32_0 = arith.constant 0 : i32
    %c0_i32_1 = arith.constant 0 : i32
    return %arg0, %c0_i32, %c0_i32_0 : i32, i32, i32
  }
}

</mosaic_0001>

<llo_original>
// kernel: tpu_custom_call.1
$region0: #{tpu_custom_call.1}
  #allocation0 [shape = 'u32[]', space=smem, size = 0x4, offset = 0x4, fixed_abs, tag = 'smem constant byte address 0x4 - core index']
  #allocation1 [shape = 'u32[144,128]{1,0:T(1,128)}', space=vmem, size = 0x12000, scoped, tag = 'internal scratch']
  %s0 = inlined_call_operand.vmem [shape: f32[4,8,4], index: 0, kind: input, shape index: {}]
  %s1 = inlined_call_operand.vmem [shape: f32[4,8,8], index: 1, kind: input, shape index: {}]
  %s2 = inlined_call_operand.vmem [shape: f32[4,4,32], index: 2, kind: input, shape index: {}]
  %s3 = inlined_call_operand.hbm [shape: f32[3,32,32], index: 3, kind: input, shape index: {}]
  %s4 = inlined_call_operand.vmem [shape: f32[4,1,32], index: 4, kind: input, shape index: {}]
  %s5 = inlined_call_operand.vmem [shape: f32[4,8,1], index: 5, kind: input, shape index: {}]
  %s6 = inlined_call_operand.hbm [shape: f32[4,8,32], index: 6, kind: output, shape index: {}]
  %s7 = sld [smem:[#allocation0]]
  $region61: #{tpu_custom_call.1} parent=0
    _
  %s9 = ssub.s32 1, %s7
  %s10 = scalar_select 0, %s9, %s7
  $region1: #{tpu_custom_call.1} parent=0
    #allocation2 [shape = 'u8[49152]{0}', space=vmem, size = 0xc000, scoped, tag = 'input window, operand 3, single buffered']
    #allocation3 [shape = 's32[2]{0}', space=sflag, size = 0x8, scoped, tag = 'scoped memory for tpu_custom_call.1']
    #allocation4 [shape = 's32[2]{0}', space=sflag, size = 0x8, scoped, tag = 'scoped memory for tpu_custom_call.1']
    #allocation5 [shape = 'u8[16384]{0}', space=vmem, size = 0x4000, scoped, tag = 'output window, operand 0']
    %11 = vsyncpa [#allocation3], 0
    %12 = vsyncpa [#allocation4], 0
    %s13 = scalar_lea.sflag [#allocation4], 1
    %14 = vsyncpa %s13, 0
    loop: start=0, step=1, limit=4
    $region2: #{tpu_custom_call.1} parent=1 // loop_pre_header
      _
    $region3: #{tpu_custom_call.1} parent=1 // loop_header
      %s16 = sphi 0, %s20
      %p17 = scmp.ge.s32.totalorder %s16, 4
      %s26 = sphi 0, %s28
      %s29 = sphi 0, %s26
      %s30 = sphi 0, %s29
      %s46 = sphi 0, %s30
      %s52 = sphi 0, %s54
      %s55 = sphi 0, %s52
      %s56 = sphi 0, %s55
      %s72 = sphi 0, %s56
      %s76 = sphi 0, %s76
      %s78 = sphi 0, %s76
      %s79 = sphi 0, %s78
      %s93 = sphi 0, %s79
      %s97 = sphi 0, %s97
      %s99 = sphi 0, %s97
      %s100 = sphi 0, %s99
      %s114 = sphi 0, %s100
      %s118 = sphi 0, %s118
      %s120 = sphi 0, %s118
      %s121 = sphi 0, %s120
      %s135 = sphi 0, %s121
      %s139 = sphi 0, %s139
      %s141 = sphi 0, %s139
      %s142 = sphi 0, %s141
      %s156 = sphi 0, %s142
      %s162 = sphi 0, %s164
      %s165 = sphi 0, %s162
      %s166 = sphi 0, %s165
      %s182 = sphi 0, %s166
    $region4: #{tpu_custom_call.1} parent=1 // loop_header_branch
      %19 = sbr.rel (%p17) target = $region8
    $region5: #{tpu_custom_call.1} parent=1 // loop_body
      %s21 = ssub.s32 %s16, 1
      %s22 = ssub.s32 %s16, 2
      %s23 = sadd.s32 %s16, 1
      %s24 = ssub.s32 %s16, %s23
      %p25 = scmp.eq.s32.totalorder %s24, 0
      %s27 = sadd.s32 %s26, 1
      %s28 = scalar_select %p25, %s26, %s27
      %p31 = pneg %p25
      %p32 = scmp.eq.s32.totalorder %s16, 1
      %p33 = por %p31, %p32
      %p34 = scmp.ne.s32.totalorder %s26, %s29
      %p35 = scmp.eq.s32.totalorder %s16, 0
      %p36 = por %p34, %p35
      %p37 = scmp.ne.s32.totalorder %s26, %s29
      %p38 = scmp.eq.s32.totalorder %s21, 1
      %p39 = por %p37, %p38
      %p40 = scmp.ne.s32.totalorder %s29, %s30
      %p41 = scmp.eq.s32.totalorder %s21, 0
      %p42 = por %p40, %p41
      %p43 = scmp.ne.s32.totalorder %s29, %s30
      %p44 = scmp.eq.s32.totalorder %s22, 1
      %p45 = por %p43, %p44
      %p47 = scmp.ne.s32.totalorder %s30, %s46
      %p48 = scmp.eq.s32.totalorder %s22, 0
      %p49 = por %p47, %p48
      %s50 = ssub.s32 %s16, %s23
      %p51 = scmp.eq.s32.totalorder %s50, 0
      %s53 = sadd.s32 %s52, 1
      %s54 = scalar_select %p51, %s52, %s53
      %p57 = pneg %p51
      %p58 = scmp.eq.s32.totalorder %s16, 1
      %p59 = por %p57, %p58
      %p60 = scmp.ne.s32.totalorder %s52, %s55
      %p61 = scmp.eq.s32.totalorder %s16, 0
      %p62 = por %p60, %p61
      %p63 = scmp.ne.s32.totalorder %s52, %s55
      %p64 = scmp.eq.s32.totalorder %s21, 1
      %p65 = por %p63, %p64
      %p66 = scmp.ne.s32.totalorder %s55, %s56
      %p67 = scmp.eq.s32.totalorder %s21, 0
      %p68 = por %p66, %p67
      %p69 = scmp.ne.s32.totalorder %s55, %s56
      %p70 = scmp.eq.s32.totalorder %s22, 1
      %p71 = por %p69, %p70
      %p73 = scmp.ne.s32.totalorder %s56, %s72
      %p74 = scmp.eq.s32.totalorder %s22, 0
      %p75 = por %p73, %p74
      %s77 = sadd.s32 %s76, 1
      %p80 = scmp.eq.s32.totalorder %s16, 1
      %p81 = scmp.ne.s32.totalorder %s76, %s78
      %p82 = scmp.eq.s32.totalorder %s16, 0
      %p83 = por %p81, %p82
      %p84 = scmp.ne.s32.totalorder %s76, %s78
      %p85 = scmp.eq.s32.totalorder %s21, 1
      %p86 = por %p84, %p85
      %p87 = scmp.ne.s32.totalorder %s78, %s79
      %p88 = scmp.eq.s32.totalorder %s21, 0
      %p89 = por %p87, %p88
      %p90 = scmp.ne.s32.totalorder %s78, %s79
      %p91 = scmp.eq.s32.totalorder %s22, 1
      %p92 = por %p90, %p91
      %p94 = scmp.ne.s32.totalorder %s79, %s93
      %p95 = scmp.eq.s32.totalorder %s22, 0
      %p96 = por %p94, %p95
      %s98 = sadd.s32 %s97, 1
      %p101 = scmp.eq.s32.totalorder %s16, 1
      %p102 = scmp.ne.s32.totalorder %s97, %s99
      %p103 = scmp.eq.s32.totalorder %s16, 0
      %p104 = por %p102, %p103
      %p105 = scmp.ne.s32.totalorder %s97, %s99
      %p106 = scmp.eq.s32.totalorder %s21, 1
      %p107 = por %p105, %p106
      %p108 = scmp.ne.s32.totalorder %s99, %s100
      %p109 = scmp.eq.s32.totalorder %s21, 0
      %p110 = por %p108, %p109
      %p111 = scmp.ne.s32.totalorder %s99, %s100
      %p112 = scmp.eq.s32.totalorder %s22, 1
      %p113 = por %p111, %p112
      %p115 = scmp.ne.s32.totalorder %s100, %s114
      %p116 = scmp.eq.s32.totalorder %s22, 0
      %p117 = por %p115, %p116
      %s119 = sadd.s32 %s118, 1
      %p122 = scmp.eq.s32.totalorder %s16, 1
      %p123 = scmp.ne.s32.totalorder %s118, %s120
      %p124 = scmp.eq.s32.totalorder %s16, 0
      %p125 = por %p123, %p124
      %p126 = scmp.ne.s32.totalorder %s118, %s120
      %p127 = scmp.eq.s32.totalorder %s21, 1
      %p128 = por %p126, %p127
      %p129 = scmp.ne.s32.totalorder %s120, %s121
      %p130 = scmp.eq.s32.totalorder %s21, 0
      %p131 = por %p129, %p130
      %p132 = scmp.ne.s32.totalorder %s120, %s121
      %p133 = scmp.eq.s32.totalorder %s22, 1
      %p134 = por %p132, %p133
      %p136 = scmp.ne.s32.totalorder %s121, %s135
      %p137 = scmp.eq.s32.totalorder %s22, 0
      %p138 = por %p136, %p137
      %s140 = sadd.s32 %s139, 1
      %p143 = scmp.eq.s32.totalorder %s16, 1
      %p144 = scmp.ne.s32.totalorder %s139, %s141
      %p145 = scmp.eq.s32.totalorder %s16, 0
      %p146 = por %p144, %p145
      %p147 = scmp.ne.s32.totalorder %s139, %s141
      %p148 = scmp.eq.s32.totalorder %s21, 1
      %p149 = por %p147, %p148
      %p150 = scmp.ne.s32.totalorder %s141, %s142
      %p151 = scmp.eq.s32.totalorder %s21, 0
      %p152 = por %p150, %p151
      %p153 = scmp.ne.s32.totalorder %s141, %s142
      %p154 = scmp.eq.s32.totalorder %s22, 1
      %p155 = por %p153, %p154
      %p157 = scmp.ne.s32.totalorder %s142, %s156
      %p158 = scmp.eq.s32.totalorder %s22, 0
      %p159 = por %p157, %p158
      %s160 = ssub.s32 %s16, %s23
      %p161 = scmp.eq.s32.totalorder %s160, 0
      %s163 = sadd.s32 %s162, 1
      %s164 = scalar_select %p161, %s162, %s163
      %p167 = pneg %p161
      %p168 = scmp.eq.s32.totalorder %s16, 1
      %p169 = por %p167, %p168
      %p170 = scmp.ne.s32.totalorder %s162, %s165
      %p171 = scmp.eq.s32.totalorder %s16, 0
      %p172 = por %p170, %p171
      %p173 = scmp.ne.s32.totalorder %s162, %s165
      %p174 = scmp.eq.s32.totalorder %s21, 1
      %p175 = por %p173, %p174
      %p176 = scmp.ne.s32.totalorder %s165, %s166
      %p177 = scmp.eq.s32.totalorder %s21, 0
      %p178 = por %p176, %p177
      %p179 = scmp.ne.s32.totalorder %s165, %s166
      %p180 = scmp.eq.s32.totalorder %s22, 1
      %p181 = por %p179, %p180
      %p183 = scmp.ne.s32.totalorder %s166, %s182
      %p184 = scmp.eq.s32.totalorder %s22, 0
      %p185 = por %p183, %p184
      %p186 = scmp.le.s32.totalorder 1, %s16
      %p187 = scmp.lt.s32.totalorder %s16, 3
      %p188 = pnand %p186, %p187
      %p189 = pneg %p188
      // Predicated region
      $region9: #{tpu_custom_call.1} parent=5 // pred_check
        _
      $region10: #{tpu_custom_call.1} parent=5 // pred_check_branch
        %191 = sbr.rel (%p188) target = $region12
      $region11: #{tpu_custom_call.1} parent=5 // pred_region
        %s192 = ssub.s32 %s16, 1
        // Predicated region
        $region13: #{tpu_custom_call.1} parent=11 // pred_check
          %p193 = pneg %p89
        $region14: #{tpu_custom_call.1} parent=11 // pred_check_branch
          %195 = sbr.rel (%p193) target = $region16
        $region15: #{tpu_custom_call.1} parent=11 // pred_region
          _
        $region16: #{tpu_custom_call.1} parent=11 // pred_fallthru
          _
        // Predicated region
        $region17: #{tpu_custom_call.1} parent=11 // pred_check
          %p196 = pneg %p110
        $region18: #{tpu_custom_call.1} parent=11 // pred_check_branch
          %198 = sbr.rel (%p196) target = $region20
        $region19: #{tpu_custom_call.1} parent=11 // pred_region
          %s200 = ssub.s32 1536, 1536
          %201 = vsyncadd [#allocation3], %s200
          %s202 = sshll.u32 [#allocation2], 4
          %s203 = int_to_ptr.vmem [resolvable:$true] %s202
          %208 = dma.hbm_to_vmem [thread:$0]  %s3, 1536, %s203, [#allocation3], 128, 128, 8
        $region20: #{tpu_custom_call.1} parent=11 // pred_fallthru
          _
        // Predicated region
        $region21: #{tpu_custom_call.1} parent=11 // pred_check
          %p209 = pneg %p131
        $region22: #{tpu_custom_call.1} parent=11 // pred_check_branch
          %211 = sbr.rel (%p209) target = $region24
        $region23: #{tpu_custom_call.1} parent=11 // pred_region
          _
        $region24: #{tpu_custom_call.1} parent=11 // pred_fallthru
          _
        // Predicated region
        $region25: #{tpu_custom_call.1} parent=11 // pred_check
          %p212 = pneg %p152
        $region26: #{tpu_custom_call.1} parent=11 // pred_check_branch
          %214 = sbr.rel (%p212) target = $region28
        $region27: #{tpu_custom_call.1} parent=11 // pred_region
          _
        $region28: #{tpu_custom_call.1} parent=11 // pred_fallthru
          _
      $region12: #{tpu_custom_call.1} parent=5 // pred_fallthru
        _
      %p215 = scmp.lt.s32.totalorder %s16, 2
      // Predicated region
      $region29: #{tpu_custom_call.1} parent=5 // pred_check
        %p216 = pneg %p215
      $region30: #{tpu_custom_call.1} parent=5 // pred_check_branch
        %218 = sbr.rel (%p216) target = $region32
      $region31: #{tpu_custom_call.1} parent=5 // pred_region
        // Predicated region
        $region33: #{tpu_custom_call.1} parent=31 // pred_check
          %p219 = pneg %p36
        $region34: #{tpu_custom_call.1} parent=31 // pred_check_branch
          %221 = sbr.rel (%p219) target = $region36
        $region35: #{tpu_custom_call.1} parent=31 // pred_region
          %s222 = smul.u32 2, %s16
          %p223 = scmp.lt.s32.totalorder %s222, 3
          %s224 = scalar_select %p223, %s222, 3
          %s225 = smul.addr %s224, 8
          %s226 = scalar_lea.vmem %s0, %s225
          %s227 = smul.u32 2, %s16
        $region36: #{tpu_custom_call.1} parent=31 // pred_fallthru
          _
        // Predicated region
        $region37: #{tpu_custom_call.1} parent=31 // pred_check
          %p228 = pneg %p62
        $region38: #{tpu_custom_call.1} parent=31 // pred_check_branch
          %230 = sbr.rel (%p228) target = $region40
        $region39: #{tpu_custom_call.1} parent=31 // pred_region
          %s231 = smul.u32 2, %s16
          %p232 = scmp.lt.s32.totalorder %s231, 3
          %s233 = scalar_select %p232, %s231, 3
          %s234 = smul.addr %s233, 8
          %s235 = scalar_lea.vmem %s1, %s234
          %s236 = smul.u32 2, %s16
        $region40: #{tpu_custom_call.1} parent=31 // pred_fallthru
          _
      $region32: #{tpu_custom_call.1} parent=5 // pred_fallthru
        _
      %p237 = scmp.le.s32.totalorder 1, %s16
      %p238 = scmp.lt.s32.totalorder %s16, 3
      %p239 = pnand %p237, %p238
      %p240 = pneg %p239
      // Predicated region
      $region41: #{tpu_custom_call.1} parent=5 // pred_check
        _
      $region42: #{tpu_custom_call.1} parent=5 // pred_check_branch
        %242 = sbr.rel (%p239) target = $region44
      $region43: #{tpu_custom_call.1} parent=5 // pred_region
        %s243 = ssub.s32 %s16, 1
        // Predicated region
        $region45: #{tpu_custom_call.1} parent=43 // pred_check
          %p244 = pneg %p110
        $region46: #{tpu_custom_call.1} parent=43 // pred_check_branch
          %246 = sbr.rel (%p244) target = $region48
        $region47: #{tpu_custom_call.1} parent=43 // pred_region
          %247 = dma.done [#allocation3], 1536
        $region48: #{tpu_custom_call.1} parent=43 // pred_fallthru
          _
        %s248 = smul.u32 2, %s21
        %p249 = scmp.lt.s32.totalorder %s248, 3
        %s250 = scalar_select %p249, %s248, 3
        %s251 = smul.addr %s250, 8
        %s252 = scalar_lea.vmem %s0, %s251
        %p253 = pneg %p42
        %p254 = pneg %p39
        %s255 = smul.u32 2, %s21
        %p256 = scmp.lt.s32.totalorder %s255, 3
        %s257 = scalar_select %p256, %s255, 3
        %s258 = smul.addr %s257, 8
        %s259 = scalar_lea.vmem %s1, %s258
        %p260 = pneg %p68
        %p261 = pneg %p65
        %p262 = pneg %p89
        %p263 = pneg %p86
        %p264 = pneg %p110
        %p265 = pneg %p107
        %p266 = pneg %p131
        %p267 = pneg %p128
        %p268 = pneg %p152
        %p269 = pneg %p149
        %p270 = pneg %p178
        %p271 = pneg %p175
        %s272 = sand.u32 %s165, 1
        %s273 = scalar_lea.sflag [#allocation4], %s272
        %s274 = sand.u32 %s165, 1
        %s275 = smul.addr %s274, 16
        %s276 = scalar_lea.vmem [#allocation5], %s275
        %s277 = smul.u32 2, %s21
        %p278 = scmp.lt.s32.totalorder %s277, 3
        %s279 = scalar_select %p278, %s277, 3
        %s280 = smul.addr %s279, 8
        %s281 = scalar_lea.vmem %s0, %s280
        %s282 = smul.u32 2, %s21
        %s283 = smul.u32 2, %s21
        %p284 = scmp.lt.s32.totalorder %s283, 3
        %s285 = scalar_select %p284, %s283, 3
        %s286 = smul.addr %s285, 8
        %s287 = scalar_lea.vmem %s1, %s286
        %s288 = smul.u32 2, %s21
        %s289 = smul.u32 2, %s21
        %v290 = vld [vmem:[%s281] sm:$0xff]
        %v291 = vld [vmem:[%s281 + $0x8] sm:$0xff]
        %v292 = vld [vmem:[%s287] sm:$0xff]
        %v293 = vld [vmem:[%s287 + $0x8] sm:$0xff]
        %v294 = vld [vmem:[%s2] sm:$0xf]
        %s295 = scalar_lea.vmem %s2, 4
        %v296 = vld [vmem:[%s295] sm:$0xf]
        %s297 = scalar_lea.vmem %s2, 8
        %v298 = vld [vmem:[%s297] sm:$0xf]
        %s299 = scalar_lea.vmem %s2, 12
        %v300 = vld [vmem:[%s299] sm:$0xf]
        %v301 = vld [vmem:[#allocation2] sm:$0xff]
        %v302 = vld [vmem:[#allocation2 + $0x8] sm:$0xff]
        %v303 = vld [vmem:[#allocation2 + $0x10] sm:$0xff]
        %v304 = vld [vmem:[#allocation2 + $0x18] sm:$0xff]
        %s305 = scalar_lea.vmem [#allocation2], 32
        %v306 = vld [vmem:[%s305] sm:$0xff]
        %v307 = vld [vmem:[%s305 + $0x8] sm:$0xff]
        %v308 = vld [vmem:[%s305 + $0x10] sm:$0xff]
        %v309 = vld [vmem:[%s305 + $0x18] sm:$0xff]
        %s310 = scalar_lea.vmem [#allocation2], 64
        %v311 = vld [vmem:[%s310] sm:$0xff]
        %v312 = vld [vmem:[%s310 + $0x8] sm:$0xff]
        %v313 = vld [vmem:[%s310 + $0x10] sm:$0xff]
        %v314 = vld [vmem:[%s310 + $0x18] sm:$0xff]
        %v315 = vld [vmem:[%s4] sm:$0x1]
        %s316 = scalar_lea.vmem %s4, 1
        %v317 = vld [vmem:[%s316] sm:$0x1]
        %s318 = scalar_lea.vmem %s4, 2
        %v319 = vld [vmem:[%s318] sm:$0x1]
        %s320 = scalar_lea.vmem %s4, 3
        %v321 = vld [vmem:[%s320] sm:$0x1]
        %v322 = vld [vmem:[%s5] sm:$0xff]
        %s323 = scalar_lea.vmem %s5, 8
        %v324 = vld [vmem:[%s323] sm:$0xff]
        %s325 = scalar_lea.vmem %s5, 16
        %v326 = vld [vmem:[%s325] sm:$0xff]
        %s327 = scalar_lea.vmem %s5, 24
        %v328 = vld [vmem:[%s327] sm:$0xff]
        %vm329 = vcmask 64512
        %v330 = vsel %vm329, %v292, 0.0
        %331 = vadd.xlane.f32.xlu0 %v330
        %v332 = vpop.xlane.xlu0 %331
        %v333 = vsel %vm329, %v293, 0.0
        %334 = vadd.xlane.f32.xlu0 %v333
        %v335 = vpop.xlane.xlu0 %334
        %v336 = vmax.f32 %v332, 1.0
        %v337 = vmax.f32 %v335, 1.0
        %v338 = vrcp.pop %v336
        %v339 = vrcp.pop %v337
        %v341 = vsel %vm329, %v292, 0
        %343 = vmatprep.subr.mxu0 0.0
        %344 = vmatpush1.msra.mxu0 0.0
        %345 = vmatprep.subr.mxu0 0.0
        %346 = vmatpush1.msra.mxu0 0.0
        %347 = vmatprep.subr.mxu0 0.0
        %348 = vmatpush1.msra.mxu0 0.0
        %349 = vmatprep.subr.mxu0 0.0
        %350 = vmatpush1.msra.mxu0 0.0
        %351 = vmatprep.subr.mxu0 0.0
        %352 = vmatpush1.msra.mxu0 0.0
        %353 = vmatprep.subr.mxu0 0.0
        %354 = vmatpush1.msra.mxu0 0.0
        %355 = vmatprep.subr.mxu0 0.0
        %356 = vmatpush1.msra.mxu0 0.0
        %357 = vmatprep.subr.mxu0 0.0
        %358 = vmatpush1.msra.mxu0 0.0
        %359 = vmatprep.subr.mxu0 0.0
        %360 = vmatpush1.msra.mxu0 0.0
        %361 = vmatprep.subr.mxu0 0.0
        %362 = vmatpush1.msra.mxu0 0.0
        %363 = vmatprep.subr.mxu0 0.0
        %364 = vmatpush1.msra.mxu0 0.0
        %365 = vmatprep.subr.mxu0 0.0
        %366 = vmatpush1.msra.mxu0 0.0
        %367 = vmatprep.subr.mxu0 0.0
        %368 = vmatpush1.msra.mxu0 0.0
        %369 = vmatprep.subr.mxu0 0.0
        %370 = vmatpush1.msra.mxu0 0.0
        %371 = vmatprep.subr.mxu0 0.0
        %372 = vmatpush1.msra.mxu0 0.0
        %373 = vmatprep.subr.mxu0 0.0
        %374 = vmatpush1.msra.mxu0 %v290
        %375 = vmatprep.subr.mxu0 0.0
        %376 = vmatpush2.msra.mxu0 0.0
        %377 = vmatprep.subr.mxu0 0.0
        %378 = vmatpush2.msra.mxu0 0.0
        %379 = vmatprep.subr.mxu0 0.0
        %380 = vmatpush2.msra.mxu0 0.0
        %381 = vmatprep.subr.mxu0 0.0
        %382 = vmatpush2.msra.mxu0 0.0
        %383 = vmatprep.subr.mxu0 0.0
        %384 = vmatpush2.msra.mxu0 0.0
        %385 = vmatprep.subr.mxu0 0.0
        %386 = vmatpush2.msra.mxu0 0.0
        %387 = vmatprep.subr.mxu0 0.0
        %388 = vmatpush2.msra.mxu0 0.0
        %389 = vmatprep.subr.mxu0 0.0
        %390 = vmatpush2.msra.mxu0 0.0
        %391 = vmatprep.subr.mxu0 0.0
        %392 = vmatpush2.msra.mxu0 0.0
        %393 = vmatprep.subr.mxu0 0.0
        %394 = vmatpush2.msra.mxu0 0.0
        %395 = vmatprep.subr.mxu0 0.0
        %396 = vmatpush2.msra.mxu0 0.0
        %397 = vmatprep.subr.mxu0 0.0
        %398 = vmatpush2.msra.mxu0 0.0
        %399 = vmatprep.subr.mxu0 0.0
        %400 = vmatpush2.msra.mxu0 0.0
        %401 = vmatprep.subr.mxu0 0.0
        %402 = vmatpush2.msra.mxu0 0.0
        %403 = vmatprep.subr.mxu0 0.0
        %404 = vmatpush2.msra.mxu0 0.0
        %405 = vmatprep.subr.mxu0 0.0
        %406 = vmatpush2.msra.mxu0 0.0
        %407 = vmatprep.mubr.f32.mxu0 0.0
        %408 = vmatmul.mubr.f32.gmra.mxu0 %v341
        %v409 = vpop.f32.mrf.mxu0
        %v410 = vadd.f32 0.0, %v409
        %v411 = vpop.f32.mrf.mxu0
        %412 = vdwg.mxu0
        %v414 = vsel %vm329, %v293, 0
        %416 = vmatprep.subr.mxu0 0.0
        %417 = vmatpush1.msra.mxu0 0.0
        %418 = vmatprep.subr.mxu0 0.0
        %419 = vmatpush1.msra.mxu0 0.0
        %420 = vmatprep.subr.mxu0 0.0
        %421 = vmatpush1.msra.mxu0 0.0
        %422 = vmatprep.subr.mxu0 0.0
        %423 = vmatpush1.msra.mxu0 0.0
        %424 = vmatprep.subr.mxu0 0.0
        %425 = vmatpush1.msra.mxu0 0.0
        %426 = vmatprep.subr.mxu0 0.0
        %427 = vmatpush1.msra.mxu0 0.0
        %428 = vmatprep.subr.mxu0 0.0
        %429 = vmatpush1.msra.mxu0 0.0
        %430 = vmatprep.subr.mxu0 0.0
        %431 = vmatpush1.msra.mxu0 0.0
        %432 = vmatprep.subr.mxu0 0.0
        %433 = vmatpush1.msra.mxu0 0.0
        %434 = vmatprep.subr.mxu0 0.0
        %435 = vmatpush1.msra.mxu0 0.0
        %436 = vmatprep.subr.mxu0 0.0
        %437 = vmatpush1.msra.mxu0 0.0
        %438 = vmatprep.subr.mxu0 0.0
        %439 = vmatpush1.msra.mxu0 0.0
        %440 = vmatprep.subr.mxu0 0.0
        %441 = vmatpush1.msra.mxu0 0.0
        %442 = vmatprep.subr.mxu0 0.0
        %443 = vmatpush1.msra.mxu0 0.0
        %444 = vmatprep.subr.mxu0 0.0
        %445 = vmatpush1.msra.mxu0 0.0
        %446 = vmatprep.subr.mxu0 0.0
        %447 = vmatpush1.msra.mxu0 %v291
        %448 = vmatprep.subr.mxu0 0.0
        %449 = vmatpush2.msra.mxu0 0.0
        %450 = vmatprep.subr.mxu0 0.0
        %451 = vmatpush2.msra.mxu0 0.0
        %452 = vmatprep.subr.mxu0 0.0
        %453 = vmatpush2.msra.mxu0 0.0
        %454 = vmatprep.subr.mxu0 0.0
        %455 = vmatpush2.msra.mxu0 0.0
        %456 = vmatprep.subr.mxu0 0.0
        %457 = vmatpush2.msra.mxu0 0.0
        %458 = vmatprep.subr.mxu0 0.0
        %459 = vmatpush2.msra.mxu0 0.0
        %460 = vmatprep.subr.mxu0 0.0
        %461 = vmatpush2.msra.mxu0 0.0
        %462 = vmatprep.subr.mxu0 0.0
        %463 = vmatpush2.msra.mxu0 0.0
        %464 = vmatprep.subr.mxu0 0.0
        %465 = vmatpush2.msra.mxu0 0.0
        %466 = vmatprep.subr.mxu0 0.0
        %467 = vmatpush2.msra.mxu0 0.0
        %468 = vmatprep.subr.mxu0 0.0
        %469 = vmatpush2.msra.mxu0 0.0
        %470 = vmatprep.subr.mxu0 0.0
        %471 = vmatpush2.msra.mxu0 0.0
        %472 = vmatprep.subr.mxu0 0.0
        %473 = vmatpush2.msra.mxu0 0.0
        %474 = vmatprep.subr.mxu0 0.0
        %475 = vmatpush2.msra.mxu0 0.0
        %476 = vmatprep.subr.mxu0 0.0
        %477 = vmatpush2.msra.mxu0 0.0
        %478 = vmatprep.subr.mxu0 0.0
        %479 = vmatpush2.msra.mxu0 0.0
        %480 = vmatprep.mubr.f32.mxu0 0.0
        %481 = vmatmul.mubr.f32.gmra.mxu0 %v414
        %v482 = vpop.f32.mrf.mxu0
        %v483 = vadd.f32 0.0, %v482
        %v484 = vpop.f32.mrf.mxu0
        %485 = vdwg.mxu0
        %v486 = vmul.f32 %v410, %v338
        %v487 = vmul.f32 %v483, %v339
        %vm488 = vcmask 31744
        %v490 = vsel %vm488, %v290, 0
        %v493 = vsel %vm488, %v291, 0
        %vm495 = vcmask 1043456
        %v497 = vsel %vm495, %v296, 0
        %499 = vmatprep.subr.mxu0 0.0
        %500 = vmatpush1.msra.mxu0 0.0
        %501 = vmatprep.subr.mxu0 0.0
        %502 = vmatpush1.msra.mxu0 0.0
        %503 = vmatprep.subr.mxu0 0.0
        %504 = vmatpush1.msra.mxu0 0.0
        %505 = vmatprep.subr.mxu0 0.0
        %506 = vmatpush1.msra.mxu0 0.0
        %507 = vmatprep.subr.mxu0 0.0
        %508 = vmatpush1.msra.mxu0 0.0
        %509 = vmatprep.subr.mxu0 0.0
        %510 = vmatpush1.msra.mxu0 0.0
        %511 = vmatprep.subr.mxu0 0.0
        %512 = vmatpush1.msra.mxu0 0.0
        %513 = vmatprep.subr.mxu0 0.0
        %514 = vmatpush1.msra.mxu0 0.0
        %515 = vmatprep.subr.mxu0 0.0
        %516 = vmatpush1.msra.mxu0 0.0
        %517 = vmatprep.subr.mxu0 0.0
        %518 = vmatpush1.msra.mxu0 0.0
        %519 = vmatprep.subr.mxu0 0.0
        %520 = vmatpush1.msra.mxu0 0.0
        %521 = vmatprep.subr.mxu0 0.0
        %522 = vmatpush1.msra.mxu0 0.0
        %523 = vmatprep.subr.mxu0 0.0
        %524 = vmatpush1.msra.mxu0 0.0
        %525 = vmatprep.subr.mxu0 0.0
        %526 = vmatpush1.msra.mxu0 0.0
        %527 = vmatprep.subr.mxu0 0.0
        %528 = vmatpush1.msra.mxu0 0.0
        %529 = vmatprep.subr.mxu0 0.0
        %530 = vmatpush1.msra.mxu0 %v497
        %531 = vmatprep.subr.mxu0 0.0
        %532 = vmatpush2.msra.mxu0 0.0
        %533 = vmatprep.subr.mxu0 0.0
        %534 = vmatpush2.msra.mxu0 0.0
        %535 = vmatprep.subr.mxu0 0.0
        %536 = vmatpush2.msra.mxu0 0.0
        %537 = vmatprep.subr.mxu0 0.0
        %538 = vmatpush2.msra.mxu0 0.0
        %539 = vmatprep.subr.mxu0 0.0
        %540 = vmatpush2.msra.mxu0 0.0
        %541 = vmatprep.subr.mxu0 0.0
        %542 = vmatpush2.msra.mxu0 0.0
        %543 = vmatprep.subr.mxu0 0.0
        %544 = vmatpush2.msra.mxu0 0.0
        %545 = vmatprep.subr.mxu0 0.0
        %546 = vmatpush2.msra.mxu0 0.0
        %547 = vmatprep.subr.mxu0 0.0
        %548 = vmatpush2.msra.mxu0 0.0
        %549 = vmatprep.subr.mxu0 0.0
        %550 = vmatpush2.msra.mxu0 0.0
        %551 = vmatprep.subr.mxu0 0.0
        %552 = vmatpush2.msra.mxu0 0.0
        %553 = vmatprep.subr.mxu0 0.0
        %554 = vmatpush2.msra.mxu0 0.0
        %555 = vmatprep.subr.mxu0 0.0
        %556 = vmatpush2.msra.mxu0 0.0
        %557 = vmatprep.subr.mxu0 0.0
        %558 = vmatpush2.msra.mxu0 0.0
        %559 = vmatprep.subr.mxu0 0.0
        %560 = vmatpush2.msra.mxu0 0.0
        %561 = vmatprep.subr.mxu0 0.0
        %562 = vmatpush2.msra.mxu0 0.0
        %563 = vmatprep.mubr.f32.mxu0 0.0
        %564 = vmatmul.mubr.f32.gmra.mxu0 %v490
        %v565 = vpop.f32.mrf.mxu0
        %v566 = vadd.f32 0.0, %v565
        %v567 = vpop.f32.mrf.mxu0
        %568 = vmatprep.mubr.f32.mxu0 0.0
        %569 = vmatmul.mubr.f32.gmra.mxu0 %v493
        %v570 = vpop.f32.mrf.mxu0
        %v571 = vadd.f32 0.0, %v570
        %v572 = vpop.f32.mrf.mxu0
        %573 = vdwg.mxu0
        %v575 = vsel %vm488, %v486, 0
        %v578 = vsel %vm488, %v487, 0
        %v581 = vsel %vm495, %v294, 0
        %583 = vmatprep.subr.mxu0 0.0
        %584 = vmatpush1.msra.mxu0 0.0
        %585 = vmatprep.subr.mxu0 0.0
        %586 = vmatpush1.msra.mxu0 0.0
        %587 = vmatprep.subr.mxu0 0.0
        %588 = vmatpush1.msra.mxu0 0.0
        %589 = vmatprep.subr.mxu0 0.0
        %590 = vmatpush1.msra.mxu0 0.0
        %591 = vmatprep.subr.mxu0 0.0
        %592 = vmatpush1.msra.mxu0 0.0
        %593 = vmatprep.subr.mxu0 0.0
        %594 = vmatpush1.msra.mxu0 0.0
        %595 = vmatprep.subr.mxu0 0.0
        %596 = vmatpush1.msra.mxu0 0.0
        %597 = vmatprep.subr.mxu0 0.0
        %598 = vmatpush1.msra.mxu0 0.0
        %599 = vmatprep.subr.mxu0 0.0
        %600 = vmatpush1.msra.mxu0 0.0
        %601 = vmatprep.subr.mxu0 0.0
        %602 = vmatpush1.msra.mxu0 0.0
        %603 = vmatprep.subr.mxu0 0.0
        %604 = vmatpush1.msra.mxu0 0.0
        %605 = vmatprep.subr.mxu0 0.0
        %606 = vmatpush1.msra.mxu0 0.0
        %607 = vmatprep.subr.mxu0 0.0
        %608 = vmatpush1.msra.mxu0 0.0
        %609 = vmatprep.subr.mxu0 0.0
        %610 = vmatpush1.msra.mxu0 0.0
        %611 = vmatprep.subr.mxu0 0.0
        %612 = vmatpush1.msra.mxu0 0.0
        %613 = vmatprep.subr.mxu0 0.0
        %614 = vmatpush1.msra.mxu0 %v581
        %615 = vmatprep.subr.mxu0 0.0
        %616 = vmatpush2.msra.mxu0 0.0
        %617 = vmatprep.subr.mxu0 0.0
        %618 = vmatpush2.msra.mxu0 0.0
        %619 = vmatprep.subr.mxu0 0.0
        %620 = vmatpush2.msra.mxu0 0.0
        %621 = vmatprep.subr.mxu0 0.0
        %622 = vmatpush2.msra.mxu0 0.0
        %623 = vmatprep.subr.mxu0 0.0
        %624 = vmatpush2.msra.mxu0 0.0
        %625 = vmatprep.subr.mxu0 0.0
        %626 = vmatpush2.msra.mxu0 0.0
        %627 = vmatprep.subr.mxu0 0.0
        %628 = vmatpush2.msra.mxu0 0.0
        %629 = vmatprep.subr.mxu0 0.0
        %630 = vmatpush2.msra.mxu0 0.0
        %631 = vmatprep.subr.mxu0 0.0
        %632 = vmatpush2.msra.mxu0 0.0
        %633 = vmatprep.subr.mxu0 0.0
        %634 = vmatpush2.msra.mxu0 0.0
        %635 = vmatprep.subr.mxu0 0.0
        %636 = vmatpush2.msra.mxu0 0.0
        %637 = vmatprep.subr.mxu0 0.0
        %638 = vmatpush2.msra.mxu0 0.0
        %639 = vmatprep.subr.mxu0 0.0
        %640 = vmatpush2.msra.mxu0 0.0
        %641 = vmatprep.subr.mxu0 0.0
        %642 = vmatpush2.msra.mxu0 0.0
        %643 = vmatprep.subr.mxu0 0.0
        %644 = vmatpush2.msra.mxu0 0.0
        %645 = vmatprep.subr.mxu0 0.0
        %646 = vmatpush2.msra.mxu0 0.0
        %647 = vmatprep.mubr.f32.mxu0 0.0
        %648 = vmatmul.mubr.f32.gmra.mxu0 %v575
        %v649 = vpop.f32.mrf.mxu0
        %v650 = vadd.f32 %v566, %v649
        %v651 = vpop.f32.mrf.mxu0
        %652 = vmatprep.mubr.f32.mxu0 0.0
        %653 = vmatmul.mubr.f32.gmra.mxu0 %v578
        %v654 = vpop.f32.mrf.mxu0
        %v655 = vadd.f32 %v571, %v654
        %v656 = vpop.f32.mrf.mxu0
        %657 = vdwg.mxu0
        %v659 = vlaneseq
        %v660 = vshrl.u32 %v659, 7
        %v661 = vsub.s32 0, %v660
        %v662 = vrot.slane %v315, %v661
        %v664 = vadd.f32 %v650, %v662
        %v665 = vadd.f32 %v655, %v662
        %v666 = vmax.f32 %v664, 0.0
        %v667 = vmax.f32 %v665, 0.0
        %v669 = vlaneseq
        %v670 = vshrl.u32 %v669, 7
        %v671 = vsub.s32 0, %v670
        %v672 = vrot.slane %v317, %v671
        %vm674 = vcmask 261120
        %v676 = vsel %vm674, %v666, 0
        %v679 = vsel %vm674, %v667, 0
        %681 = vmatprep.subr.mxu0 0.0
        %682 = vmatpush1.msra.mxu0 0.0
        %683 = vmatprep.subr.mxu0 0.0
        %684 = vmatpush1.msra.mxu0 0.0
        %685 = vmatprep.subr.mxu0 0.0
        %686 = vmatpush1.msra.mxu0 0.0
        %687 = vmatprep.subr.mxu0 0.0
        %688 = vmatpush1.msra.mxu0 0.0
        %689 = vmatprep.subr.mxu0 0.0
        %690 = vmatpush1.msra.mxu0 0.0
        %691 = vmatprep.subr.mxu0 0.0
        %692 = vmatpush1.msra.mxu0 0.0
        %693 = vmatprep.subr.mxu0 0.0
        %694 = vmatpush1.msra.mxu0 0.0
        %695 = vmatprep.subr.mxu0 0.0
        %696 = vmatpush1.msra.mxu0 0.0
        %697 = vmatprep.subr.mxu0 0.0
        %698 = vmatpush1.msra.mxu0 0.0
        %699 = vmatprep.subr.mxu0 0.0
        %700 = vmatpush1.msra.mxu0 0.0
        %701 = vmatprep.subr.mxu0 0.0
        %702 = vmatpush1.msra.mxu0 0.0
        %703 = vmatprep.subr.mxu0 0.0
        %704 = vmatpush1.msra.mxu0 0.0
        %705 = vmatprep.subr.mxu0 0.0
        %706 = vmatpush1.msra.mxu0 %v304
        %707 = vmatprep.subr.mxu0 0.0
        %708 = vmatpush1.msra.mxu0 %v303
        %709 = vmatprep.subr.mxu0 0.0
        %710 = vmatpush1.msra.mxu0 %v302
        %711 = vmatprep.subr.mxu0 0.0
        %712 = vmatpush1.msra.mxu0 %v301
        %713 = vmatprep.subr.mxu0 0.0
        %714 = vmatpush2.msra.mxu0 0.0
        %715 = vmatprep.subr.mxu0 0.0
        %716 = vmatpush2.msra.mxu0 0.0
        %717 = vmatprep.subr.mxu0 0.0
        %718 = vmatpush2.msra.mxu0 0.0
        %719 = vmatprep.subr.mxu0 0.0
        %720 = vmatpush2.msra.mxu0 0.0
        %721 = vmatprep.subr.mxu0 0.0
        %722 = vmatpush2.msra.mxu0 0.0
        %723 = vmatprep.subr.mxu0 0.0
        %724 = vmatpush2.msra.mxu0 0.0
        %725 = vmatprep.subr.mxu0 0.0
        %726 = vmatpush2.msra.mxu0 0.0
        %727 = vmatprep.subr.mxu0 0.0
        %728 = vmatpush2.msra.mxu0 0.0
        %729 = vmatprep.subr.mxu0 0.0
        %730 = vmatpush2.msra.mxu0 0.0
        %731 = vmatprep.subr.mxu0 0.0
        %732 = vmatpush2.msra.mxu0 0.0
        %733 = vmatprep.subr.mxu0 0.0
        %734 = vmatpush2.msra.mxu0 0.0
        %735 = vmatprep.subr.mxu0 0.0
        %736 = vmatpush2.msra.mxu0 0.0
        %737 = vmatprep.subr.mxu0 0.0
        %738 = vmatpush2.msra.mxu0 0.0
        %739 = vmatprep.subr.mxu0 0.0
        %740 = vmatpush2.msra.mxu0 0.0
        %741 = vmatprep.subr.mxu0 0.0
        %742 = vmatpush2.msra.mxu0 0.0
        %743 = vmatprep.subr.mxu0 0.0
        %744 = vmatpush2.msra.mxu0 0.0
        %745 = vmatprep.mubr.f32.mxu0 0.0
        %746 = vmatmul.mubr.f32.gmra.mxu0 %v676
        %v747 = vpop.f32.mrf.mxu0
        %v748 = vadd.f32 %v672, %v747
        %v749 = vpop.f32.mrf.mxu0
        %750 = vmatprep.mubr.f32.mxu0 0.0
        %751 = vmatmul.mubr.f32.gmra.mxu0 %v679
        %v752 = vpop.f32.mrf.mxu0
        %v753 = vadd.f32 %v672, %v752
        %v754 = vpop.f32.mrf.mxu0
        %755 = vdwg.mxu0
        %757 = vset.pattern.permute.xlu0 0
        %758 = vperm.xlu0 %757, %v322
        %v759 = vpop.permute.xlu0 %758
        %v761 = vmul.f32 %v748, %v759
        %v762 = vmul.f32 %v753, %v759
        %764 = vset.pattern.permute.xlu0 0
        %765 = vperm.xlu0 %764, %v324
        %v766 = vpop.permute.xlu0 %765
        %v768 = vadd.f32 %v761, %v766
        %v769 = vadd.f32 %v762, %v766
        %770 = vmatprep.subr.mxu0 0.0
        %771 = vmatpush1.msra.mxu0 0.0
        %772 = vmatprep.subr.mxu0 0.0
        %773 = vmatpush1.msra.mxu0 0.0
        %774 = vmatprep.subr.mxu0 0.0
        %775 = vmatpush1.msra.mxu0 0.0
        %776 = vmatprep.subr.mxu0 0.0
        %777 = vmatpush1.msra.mxu0 0.0
        %778 = vmatprep.subr.mxu0 0.0
        %779 = vmatpush1.msra.mxu0 0.0
        %780 = vmatprep.subr.mxu0 0.0
        %781 = vmatpush1.msra.mxu0 0.0
        %782 = vmatprep.subr.mxu0 0.0
        %783 = vmatpush1.msra.mxu0 0.0
        %784 = vmatprep.subr.mxu0 0.0
        %785 = vmatpush1.msra.mxu0 0.0
        %786 = vmatprep.subr.mxu0 0.0
        %787 = vmatpush1.msra.mxu0 0.0
        %788 = vmatprep.subr.mxu0 0.0
        %789 = vmatpush1.msra.mxu0 0.0
        %790 = vmatprep.subr.mxu0 0.0
        %791 = vmatpush1.msra.mxu0 0.0
        %792 = vmatprep.subr.mxu0 0.0
        %793 = vmatpush1.msra.mxu0 0.0
        %794 = vmatprep.subr.mxu0 0.0
        %795 = vmatpush1.msra.mxu0 0.0
        %796 = vmatprep.subr.mxu0 0.0
        %797 = vmatpush1.msra.mxu0 0.0
        %798 = vmatprep.subr.mxu0 0.0
        %799 = vmatpush1.msra.mxu0 0.0
        %800 = vmatprep.subr.mxu0 0.0
        %801 = vmatpush1.msra.mxu0 %v768
        %802 = vmatprep.subr.mxu0 0.0
        %803 = vmatpush2.msra.mxu0 0.0
        %804 = vmatprep.subr.mxu0 0.0
        %805 = vmatpush2.msra.mxu0 0.0
        %806 = vmatprep.subr.mxu0 0.0
        %807 = vmatpush2.msra.mxu0 0.0
        %808 = vmatprep.subr.mxu0 0.0
        %809 = vmatpush2.msra.mxu0 0.0
        %810 = vmatprep.subr.mxu0 0.0
        %811 = vmatpush2.msra.mxu0 0.0
        %812 = vmatprep.subr.mxu0 0.0
        %813 = vmatpush2.msra.mxu0 0.0
        %814 = vmatprep.subr.mxu0 0.0
        %815 = vmatpush2.msra.mxu0 0.0
        %816 = vmatprep.subr.mxu0 0.0
        %817 = vmatpush2.msra.mxu0 0.0
        %818 = vmatprep.subr.mxu0 0.0
        %819 = vmatpush2.msra.mxu0 0.0
        %820 = vmatprep.subr.mxu0 0.0
        %821 = vmatpush2.msra.mxu0 0.0
        %822 = vmatprep.subr.mxu0 0.0
        %823 = vmatpush2.msra.mxu0 0.0
        %824 = vmatprep.subr.mxu0 0.0
        %825 = vmatpush2.msra.mxu0 0.0
        %826 = vmatprep.subr.mxu0 0.0
        %827 = vmatpush2.msra.mxu0 0.0
        %828 = vmatprep.subr.mxu0 0.0
        %829 = vmatpush2.msra.mxu0 0.0
        %830 = vmatprep.subr.mxu0 0.0
        %831 = vmatpush2.msra.mxu0 0.0
        %832 = vmatprep.subr.mxu0 0.0
        %833 = vmatpush2.msra.mxu0 0.0
        %834 = vmatprep.mubr.f32.mxu0 0.0
        %835 = vmatmul.mubr.f32.gmra.mxu0 %v341
        %v836 = vpop.f32.mrf.mxu0
        %v837 = vadd.f32 0.0, %v836
        %v838 = vpop.f32.mrf.mxu0
        %839 = vdwg.mxu0
        %840 = vmatprep.subr.mxu0 0.0
        %841 = vmatpush1.msra.mxu0 0.0
        %842 = vmatprep.subr.mxu0 0.0
        %843 = vmatpush1.msra.mxu0 0.0
        %844 = vmatprep.subr.mxu0 0.0
        %845 = vmatpush1.msra.mxu0 0.0
        %846 = vmatprep.subr.mxu0 0.0
        %847 = vmatpush1.msra.mxu0 0.0
        %848 = vmatprep.subr.mxu0 0.0
        %849 = vmatpush1.msra.mxu0 0.0
        %850 = vmatprep.subr.mxu0 0.0
        %851 = vmatpush1.msra.mxu0 0.0
        %852 = vmatprep.subr.mxu0 0.0
        %853 = vmatpush1.msra.mxu0 0.0
        %854 = vmatprep.subr.mxu0 0.0
        %855 = vmatpush1.msra.mxu0 0.0
        %856 = vmatprep.subr.mxu0 0.0
        %857 = vmatpush1.msra.mxu0 0.0
        %858 = vmatprep.subr.mxu0 0.0
        %859 = vmatpush1.msra.mxu0 0.0
        %860 = vmatprep.subr.mxu0 0.0
        %861 = vmatpush1.msra.mxu0 0.0
        %862 = vmatprep.subr.mxu0 0.0
        %863 = vmatpush1.msra.mxu0 0.0
        %864 = vmatprep.subr.mxu0 0.0
        %865 = vmatpush1.msra.mxu0 0.0
        %866 = vmatprep.subr.mxu0 0.0
        %867 = vmatpush1.msra.mxu0 0.0
        %868 = vmatprep.subr.mxu0 0.0
        %869 = vmatpush1.msra.mxu0 0.0
        %870 = vmatprep.subr.mxu0 0.0
        %871 = vmatpush1.msra.mxu0 %v769
        %872 = vmatprep.subr.mxu0 0.0
        %873 = vmatpush2.msra.mxu0 0.0
        %874 = vmatprep.subr.mxu0 0.0
        %875 = vmatpush2.msra.mxu0 0.0
        %876 = vmatprep.subr.mxu0 0.0
        %877 = vmatpush2.msra.mxu0 0.0
        %878 = vmatprep.subr.mxu0 0.0
        %879 = vmatpush2.msra.mxu0 0.0
        %880 = vmatprep.subr.mxu0 0.0
        %881 = vmatpush2.msra.mxu0 0.0
        %882 = vmatprep.subr.mxu0 0.0
        %883 = vmatpush2.msra.mxu0 0.0
        %884 = vmatprep.subr.mxu0 0.0
        %885 = vmatpush2.msra.mxu0 0.0
        %886 = vmatprep.subr.mxu0 0.0
        %887 = vmatpush2.msra.mxu0 0.0
        %888 = vmatprep.subr.mxu0 0.0
        %889 = vmatpush2.msra.mxu0 0.0
        %890 = vmatprep.subr.mxu0 0.0
        %891 = vmatpush2.msra.mxu0 0.0
        %892 = vmatprep.subr.mxu0 0.0
        %893 = vmatpush2.msra.mxu0 0.0
        %894 = vmatprep.subr.mxu0 0.0
        %895 = vmatpush2.msra.mxu0 0.0
        %896 = vmatprep.subr.mxu0 0.0
        %897 = vmatpush2.msra.mxu0 0.0
        %898 = vmatprep.subr.mxu0 0.0
        %899 = vmatpush2.msra.mxu0 0.0
        %900 = vmatprep.subr.mxu0 0.0
        %901 = vmatpush2.msra.mxu0 0.0
        %902 = vmatprep.subr.mxu0 0.0
        %903 = vmatpush2.msra.mxu0 0.0
        %904 = vmatprep.mubr.f32.mxu0 0.0
        %905 = vmatmul.mubr.f32.gmra.mxu0 %v414
        %v906 = vpop.f32.mrf.mxu0
        %v907 = vadd.f32 0.0, %v906
        %v908 = vpop.f32.mrf.mxu0
        %909 = vdwg.mxu0
        %v910 = vmul.f32 %v837, %v338
        %v911 = vmul.f32 %v907, %v339
        %v913 = vsel %vm674, %v768, 0
        %v916 = vsel %vm674, %v769, 0
        %918 = vmatprep.subr.mxu0 0.0
        %919 = vmatpush1.msra.mxu0 0.0
        %920 = vmatprep.subr.mxu0 0.0
        %921 = vmatpush1.msra.mxu0 0.0
        %922 = vmatprep.subr.mxu0 0.0
        %923 = vmatpush1.msra.mxu0 0.0
        %924 = vmatprep.subr.mxu0 0.0
        %925 = vmatpush1.msra.mxu0 0.0
        %926 = vmatprep.subr.mxu0 0.0
        %927 = vmatpush1.msra.mxu0 0.0
        %928 = vmatprep.subr.mxu0 0.0
        %929 = vmatpush1.msra.mxu0 0.0
        %930 = vmatprep.subr.mxu0 0.0
        %931 = vmatpush1.msra.mxu0 0.0
        %932 = vmatprep.subr.mxu0 0.0
        %933 = vmatpush1.msra.mxu0 0.0
        %934 = vmatprep.subr.mxu0 0.0
        %935 = vmatpush1.msra.mxu0 0.0
        %936 = vmatprep.subr.mxu0 0.0
        %937 = vmatpush1.msra.mxu0 0.0
        %938 = vmatprep.subr.mxu0 0.0
        %939 = vmatpush1.msra.mxu0 0.0
        %940 = vmatprep.subr.mxu0 0.0
        %941 = vmatpush1.msra.mxu0 0.0
        %942 = vmatprep.subr.mxu0 0.0
        %943 = vmatpush1.msra.mxu0 %v314
        %944 = vmatprep.subr.mxu0 0.0
        %945 = vmatpush1.msra.mxu0 %v313
        %946 = vmatprep.subr.mxu0 0.0
        %947 = vmatpush1.msra.mxu0 %v312
        %948 = vmatprep.subr.mxu0 0.0
        %949 = vmatpush1.msra.mxu0 %v311
        %950 = vmatprep.subr.mxu0 0.0
        %951 = vmatpush2.msra.mxu0 0.0
        %952 = vmatprep.subr.mxu0 0.0
        %953 = vmatpush2.msra.mxu0 0.0
        %954 = vmatprep.subr.mxu0 0.0
        %955 = vmatpush2.msra.mxu0 0.0
        %956 = vmatprep.subr.mxu0 0.0
        %957 = vmatpush2.msra.mxu0 0.0
        %958 = vmatprep.subr.mxu0 0.0
        %959 = vmatpush2.msra.mxu0 0.0
        %960 = vmatprep.subr.mxu0 0.0
        %961 = vmatpush2.msra.mxu0 0.0
        %962 = vmatprep.subr.mxu0 0.0
        %963 = vmatpush2.msra.mxu0 0.0
        %964 = vmatprep.subr.mxu0 0.0
        %965 = vmatpush2.msra.mxu0 0.0
        %966 = vmatprep.subr.mxu0 0.0
        %967 = vmatpush2.msra.mxu0 0.0
        %968 = vmatprep.subr.mxu0 0.0
        %969 = vmatpush2.msra.mxu0 0.0
        %970 = vmatprep.subr.mxu0 0.0
        %971 = vmatpush2.msra.mxu0 0.0
        %972 = vmatprep.subr.mxu0 0.0
        %973 = vmatpush2.msra.mxu0 0.0
        %974 = vmatprep.subr.mxu0 0.0
        %975 = vmatpush2.msra.mxu0 0.0
        %976 = vmatprep.subr.mxu0 0.0
        %977 = vmatpush2.msra.mxu0 0.0
        %978 = vmatprep.subr.mxu0 0.0
        %979 = vmatpush2.msra.mxu0 0.0
        %980 = vmatprep.subr.mxu0 0.0
        %981 = vmatpush2.msra.mxu0 0.0
        %982 = vmatprep.mubr.f32.mxu0 0.0
        %983 = vmatmul.mubr.f32.gmra.mxu0 %v913
        %v984 = vpop.f32.mrf.mxu0
        %v985 = vadd.f32 0.0, %v984
        %v986 = vpop.f32.mrf.mxu0
        %987 = vmatprep.mubr.f32.mxu0 0.0
        %988 = vmatmul.mubr.f32.gmra.mxu0 %v916
        %v989 = vpop.f32.mrf.mxu0
        %v990 = vadd.f32 0.0, %v989
        %v991 = vpop.f32.mrf.mxu0
        %992 = vdwg.mxu0
        %v994 = vsel %vm674, %v910, 0
        %v997 = vsel %vm674, %v911, 0
        %999 = vmatprep.subr.mxu0 0.0
        %1000 = vmatpush1.msra.mxu0 0.0
        %1001 = vmatprep.subr.mxu0 0.0
        %1002 = vmatpush1.msra.mxu0 0.0
        %1003 = vmatprep.subr.mxu0 0.0
        %1004 = vmatpush1.msra.mxu0 0.0
        %1005 = vmatprep.subr.mxu0 0.0
        %1006 = vmatpush1.msra.mxu0 0.0
        %1007 = vmatprep.subr.mxu0 0.0
        %1008 = vmatpush1.msra.mxu0 0.0
        %1009 = vmatprep.subr.mxu0 0.0
        %1010 = vmatpush1.msra.mxu0 0.0
        %1011 = vmatprep.subr.mxu0 0.0
        %1012 = vmatpush1.msra.mxu0 0.0
        %1013 = vmatprep.subr.mxu0 0.0
        %1014 = vmatpush1.msra.mxu0 0.0
        %1015 = vmatprep.subr.mxu0 0.0
        %1016 = vmatpush1.msra.mxu0 0.0
        %1017 = vmatprep.subr.mxu0 0.0
        %1018 = vmatpush1.msra.mxu0 0.0
        %1019 = vmatprep.subr.mxu0 0.0
        %1020 = vmatpush1.msra.mxu0 0.0
        %1021 = vmatprep.subr.mxu0 0.0
        %1022 = vmatpush1.msra.mxu0 0.0
        %1023 = vmatprep.subr.mxu0 0.0
        %1024 = vmatpush1.msra.mxu0 %v309
        %1025 = vmatprep.subr.mxu0 0.0
        %1026 = vmatpush1.msra.mxu0 %v308
        %1027 = vmatprep.subr.mxu0 0.0
        %1028 = vmatpush1.msra.mxu0 %v307
        %1029 = vmatprep.subr.mxu0 0.0
        %1030 = vmatpush1.msra.mxu0 %v306
        %1031 = vmatprep.subr.mxu0 0.0
        %1032 = vmatpush2.msra.mxu0 0.0
        %1033 = vmatprep.subr.mxu0 0.0
        %1034 = vmatpush2.msra.mxu0 0.0
        %1035 = vmatprep.subr.mxu0 0.0
        %1036 = vmatpush2.msra.mxu0 0.0
        %1037 = vmatprep.subr.mxu0 0.0
        %1038 = vmatpush2.msra.mxu0 0.0
        %1039 = vmatprep.subr.mxu0 0.0
        %1040 = vmatpush2.msra.mxu0 0.0
        %1041 = vmatprep.subr.mxu0 0.0
        %1042 = vmatpush2.msra.mxu0 0.0
        %1043 = vmatprep.subr.mxu0 0.0
        %1044 = vmatpush2.msra.mxu0 0.0
        %1045 = vmatprep.subr.mxu0 0.0
        %1046 = vmatpush2.msra.mxu0 0.0
        %1047 = vmatprep.subr.mxu0 0.0
        %1048 = vmatpush2.msra.mxu0 0.0
        %1049 = vmatprep.subr.mxu0 0.0
        %1050 = vmatpush2.msra.mxu0 0.0
        %1051 = vmatprep.subr.mxu0 0.0
        %1052 = vmatpush2.msra.mxu0 0.0
        %1053 = vmatprep.subr.mxu0 0.0
        %1054 = vmatpush2.msra.mxu0 0.0
        %1055 = vmatprep.subr.mxu0 0.0
        %1056 = vmatpush2.msra.mxu0 0.0
        %1057 = vmatprep.subr.mxu0 0.0
        %1058 = vmatpush2.msra.mxu0 0.0
        %1059 = vmatprep.subr.mxu0 0.0
        %1060 = vmatpush2.msra.mxu0 0.0
        %1061 = vmatprep.subr.mxu0 0.0
        %1062 = vmatpush2.msra.mxu0 0.0
        %1063 = vmatprep.mubr.f32.mxu0 0.0
        %1064 = vmatmul.mubr.f32.gmra.mxu0 %v994
        %v1065 = vpop.f32.mrf.mxu0
        %v1066 = vadd.f32 %v985, %v1065
        %v1067 = vpop.f32.mrf.mxu0
        %1068 = vmatprep.mubr.f32.mxu0 0.0
        %1069 = vmatmul.mubr.f32.gmra.mxu0 %v997
        %v1070 = vpop.f32.mrf.mxu0
        %v1071 = vadd.f32 %v990, %v1070
        %v1072 = vpop.f32.mrf.mxu0
        %1073 = vdwg.mxu0
        %v1075 = vlaneseq
        %v1076 = vshrl.u32 %v1075, 7
        %v1077 = vsub.s32 0, %v1076
        %v1078 = vrot.slane %v319, %v1077
        %v1080 = vadd.f32 %v1066, %v1078
        %v1081 = vadd.f32 %v1071, %v1078
        %v1082 = vmax.f32 %v1080, 0.0
        %v1083 = vmax.f32 %v1081, 0.0
        %1085 = vset.pattern.permute.xlu0 0
        %1086 = vperm.xlu0 %1085, %v326
        %v1087 = vpop.permute.xlu0 %1086
        %v1089 = vmul.f32 %v1082, %v1087
        %v1090 = vmul.f32 %v1083, %v1087
        %1092 = vset.pattern.permute.xlu0 0
        %1093 = vperm.xlu0 %1092, %v328
        %v1094 = vpop.permute.xlu0 %1093
        %v1096 = vadd.f32 %v1089, %v1094
        %v1097 = vadd.f32 %v1090, %v1094
        %v1099 = vsel %vm495, %v300, 0
        %1101 = vmatprep.subr.mxu0 0.0
        %1102 = vmatpush1.msra.mxu0 0.0
        %1103 = vmatprep.subr.mxu0 0.0
        %1104 = vmatpush1.msra.mxu0 0.0
        %1105 = vmatprep.subr.mxu0 0.0
        %1106 = vmatpush1.msra.mxu0 0.0
        %1107 = vmatprep.subr.mxu0 0.0
        %1108 = vmatpush1.msra.mxu0 0.0
        %1109 = vmatprep.subr.mxu0 0.0
        %1110 = vmatpush1.msra.mxu0 0.0
        %1111 = vmatprep.subr.mxu0 0.0
        %1112 = vmatpush1.msra.mxu0 0.0
        %1113 = vmatprep.subr.mxu0 0.0
        %1114 = vmatpush1.msra.mxu0 0.0
        %1115 = vmatprep.subr.mxu0 0.0
        %1116 = vmatpush1.msra.mxu0 0.0
        %1117 = vmatprep.subr.mxu0 0.0
        %1118 = vmatpush1.msra.mxu0 0.0
        %1119 = vmatprep.subr.mxu0 0.0
        %1120 = vmatpush1.msra.mxu0 0.0
        %1121 = vmatprep.subr.mxu0 0.0
        %1122 = vmatpush1.msra.mxu0 0.0
        %1123 = vmatprep.subr.mxu0 0.0
        %1124 = vmatpush1.msra.mxu0 0.0
        %1125 = vmatprep.subr.mxu0 0.0
        %1126 = vmatpush1.msra.mxu0 0.0
        %1127 = vmatprep.subr.mxu0 0.0
        %1128 = vmatpush1.msra.mxu0 0.0
        %1129 = vmatprep.subr.mxu0 0.0
        %1130 = vmatpush1.msra.mxu0 0.0
        %1131 = vmatprep.subr.mxu0 0.0
        %1132 = vmatpush1.msra.mxu0 %v1099
        %1133 = vmatprep.subr.mxu0 0.0
        %1134 = vmatpush2.msra.mxu0 0.0
        %1135 = vmatprep.subr.mxu0 0.0
        %1136 = vmatpush2.msra.mxu0 0.0
        %1137 = vmatprep.subr.mxu0 0.0
        %1138 = vmatpush2.msra.mxu0 0.0
        %1139 = vmatprep.subr.mxu0 0.0
        %1140 = vmatpush2.msra.mxu0 0.0
        %1141 = vmatprep.subr.mxu0 0.0
        %1142 = vmatpush2.msra.mxu0 0.0
        %1143 = vmatprep.subr.mxu0 0.0
        %1144 = vmatpush2.msra.mxu0 0.0
        %1145 = vmatprep.subr.mxu0 0.0
        %1146 = vmatpush2.msra.mxu0 0.0
        %1147 = vmatprep.subr.mxu0 0.0
        %1148 = vmatpush2.msra.mxu0 0.0
        %1149 = vmatprep.subr.mxu0 0.0
        %1150 = vmatpush2.msra.mxu0 0.0
        %1151 = vmatprep.subr.mxu0 0.0
        %1152 = vmatpush2.msra.mxu0 0.0
        %1153 = vmatprep.subr.mxu0 0.0
        %1154 = vmatpush2.msra.mxu0 0.0
        %1155 = vmatprep.subr.mxu0 0.0
        %1156 = vmatpush2.msra.mxu0 0.0
        %1157 = vmatprep.subr.mxu0 0.0
        %1158 = vmatpush2.msra.mxu0 0.0
        %1159 = vmatprep.subr.mxu0 0.0
        %1160 = vmatpush2.msra.mxu0 0.0
        %1161 = vmatprep.subr.mxu0 0.0
        %1162 = vmatpush2.msra.mxu0 0.0
        %1163 = vmatprep.subr.mxu0 0.0
        %1164 = vmatpush2.msra.mxu0 0.0
        %1165 = vmatprep.mubr.f32.mxu0 0.0
        %1166 = vmatmul.mubr.f32.gmra.mxu0 %v490
        %v1167 = vpop.f32.mrf.mxu0
        %v1168 = vadd.f32 0.0, %v1167
        %v1169 = vpop.f32.mrf.mxu0
        %1170 = vmatprep.mubr.f32.mxu0 0.0
        %1171 = vmatmul.mubr.f32.gmra.mxu0 %v493
        %v1172 = vpop.f32.mrf.mxu0
        %v1173 = vadd.f32 0.0, %v1172
        %v1174 = vpop.f32.mrf.mxu0
        %1175 = vdwg.mxu0
        %v1177 = vsel %vm495, %v298, 0
        %1179 = vmatprep.subr.mxu0 0.0
        %1180 = vmatpush1.msra.mxu0 0.0
        %1181 = vmatprep.subr.mxu0 0.0
        %1182 = vmatpush1.msra.mxu0 0.0
        %1183 = vmatprep.subr.mxu0 0.0
        %1184 = vmatpush1.msra.mxu0 0.0
        %1185 = vmatprep.subr.mxu0 0.0
        %1186 = vmatpush1.msra.mxu0 0.0
        %1187 = vmatprep.subr.mxu0 0.0
        %1188 = vmatpush1.msra.mxu0 0.0
        %1189 = vmatprep.subr.mxu0 0.0
        %1190 = vmatpush1.msra.mxu0 0.0
        %1191 = vmatprep.subr.mxu0 0.0
        %1192 = vmatpush1.msra.mxu0 0.0
        %1193 = vmatprep.subr.mxu0 0.0
        %1194 = vmatpush1.msra.mxu0 0.0
        %1195 = vmatprep.subr.mxu0 0.0
        %1196 = vmatpush1.msra.mxu0 0.0
        %1197 = vmatprep.subr.mxu0 0.0
        %1198 = vmatpush1.msra.mxu0 0.0
        %1199 = vmatprep.subr.mxu0 0.0
        %1200 = vmatpush1.msra.mxu0 0.0
        %1201 = vmatprep.subr.mxu0 0.0
        %1202 = vmatpush1.msra.mxu0 0.0
        %1203 = vmatprep.subr.mxu0 0.0
        %1204 = vmatpush1.msra.mxu0 0.0
        %1205 = vmatprep.subr.mxu0 0.0
        %1206 = vmatpush1.msra.mxu0 0.0
        %1207 = vmatprep.subr.mxu0 0.0
        %1208 = vmatpush1.msra.mxu0 0.0
        %1209 = vmatprep.subr.mxu0 0.0
        %1210 = vmatpush1.msra.mxu0 %v1177
        %1211 = vmatprep.subr.mxu0 0.0
        %1212 = vmatpush2.msra.mxu0 0.0
        %1213 = vmatprep.subr.mxu0 0.0
        %1214 = vmatpush2.msra.mxu0 0.0
        %1215 = vmatprep.subr.mxu0 0.0
        %1216 = vmatpush2.msra.mxu0 0.0
        %1217 = vmatprep.subr.mxu0 0.0
        %1218 = vmatpush2.msra.mxu0 0.0
        %1219 = vmatprep.subr.mxu0 0.0
        %1220 = vmatpush2.msra.mxu0 0.0
        %1221 = vmatprep.subr.mxu0 0.0
        %1222 = vmatpush2.msra.mxu0 0.0
        %1223 = vmatprep.subr.mxu0 0.0
        %1224 = vmatpush2.msra.mxu0 0.0
        %1225 = vmatprep.subr.mxu0 0.0
        %1226 = vmatpush2.msra.mxu0 0.0
        %1227 = vmatprep.subr.mxu0 0.0
        %1228 = vmatpush2.msra.mxu0 0.0
        %1229 = vmatprep.subr.mxu0 0.0
        %1230 = vmatpush2.msra.mxu0 0.0
        %1231 = vmatprep.subr.mxu0 0.0
        %1232 = vmatpush2.msra.mxu0 0.0
        %1233 = vmatprep.subr.mxu0 0.0
        %1234 = vmatpush2.msra.mxu0 0.0
        %1235 = vmatprep.subr.mxu0 0.0
        %1236 = vmatpush2.msra.mxu0 0.0
        %1237 = vmatprep.subr.mxu0 0.0
        %1238 = vmatpush2.msra.mxu0 0.0
        %1239 = vmatprep.subr.mxu0 0.0
        %1240 = vmatpush2.msra.mxu0 0.0
        %1241 = vmatprep.subr.mxu0 0.0
        %1242 = vmatpush2.msra.mxu0 0.0
        %1243 = vmatprep.mubr.f32.mxu0 0.0
        %1244 = vmatmul.mubr.f32.gmra.mxu0 %v575
        %v1245 = vpop.f32.mrf.mxu0
        %v1246 = vadd.f32 %v1168, %v1245
        %v1247 = vpop.f32.mrf.mxu0
        %1248 = vmatprep.mubr.f32.mxu0 0.0
        %1249 = vmatmul.mubr.f32.gmra.mxu0 %v578
        %v1250 = vpop.f32.mrf.mxu0
        %v1251 = vadd.f32 %v1173, %v1250
        %v1252 = vpop.f32.mrf.mxu0
        %1253 = vdwg.mxu0
        %v1255 = vlaneseq
        %v1256 = vshrl.u32 %v1255, 7
        %v1257 = vsub.s32 0, %v1256
        %v1258 = vrot.slane %v321, %v1257
        %v1260 = vadd.f32 %v1246, %v1258
        %v1261 = vadd.f32 %v1251, %v1258
        %v1262 = vadd.f32 %v1096, %v1260
        %v1263 = vadd.f32 %v1097, %v1261
        %1264 = vst.msk [vmem:[%s276] sm:$0xff] %vm674, %v1262
        %1265 = vst.msk [vmem:[%s276 + $0x8] sm:$0xff] %vm674, %v1263
        %s1266 = sand.u32 %s165, 1
        %s1267 = scalar_lea.sflag [#allocation4], %s1266
        %s1268 = sand.u32 %s165, 1
        %s1269 = smul.addr %s1268, 16
        %s1270 = scalar_lea.vmem [#allocation5], %s1269
        // Predicated region
        $region49: #{tpu_custom_call.1} parent=43 // pred_check
          %p1271 = pneg %p175
        $region50: #{tpu_custom_call.1} parent=43 // pred_check_branch
          %1273 = sbr.rel (%p1271) target = $region52
        $region51: #{tpu_custom_call.1} parent=43 // pred_region
          %s1274 = smul.u32 2, %s21
          %s1276 = ssub.s32 256, 256
          %1277 = vsyncadd %s1267, %s1276
          %s1278 = smul.addr %s1274, 128
          %s1279 = scalar_lea.hbm %s6, %s1278
          %s1280 = sshll.u32 %s1270, 4
          %s1281 = int_to_ptr.vmem [resolvable:$true] %s1280
          %1286 = dma.vmem_to_hbm [thread:$0]  %s1281, 256, %s1279, %s1267, 128, 128, 8
        $region52: #{tpu_custom_call.1} parent=43 // pred_fallthru
          _
      $region44: #{tpu_custom_call.1} parent=5 // pred_fallthru
        _
      %p1287 = scmp.le.s32.totalorder 2, %s16
      // Predicated region
      $region53: #{tpu_custom_call.1} parent=5 // pred_check
        %p1288 = pneg %p1287
      $region54: #{tpu_custom_call.1} parent=5 // pred_check_branch
        %1290 = sbr.rel (%p1288) target = $region56
      $region55: #{tpu_custom_call.1} parent=5 // pred_region
        %s1291 = ssub.s32 %s16, 2
        // Predicated region
        $region57: #{tpu_custom_call.1} parent=55 // pred_check
          %p1292 = pneg %p181
        $region58: #{tpu_custom_call.1} parent=55 // pred_check_branch
          %1294 = sbr.rel (%p1292) target = $region60
        $region59: #{tpu_custom_call.1} parent=55 // pred_region
          %s1295 = sand.u32 %s166, 1
          %s1296 = scalar_lea.sflag [#allocation4], %s1295
          %s1297 = sand.u32 %s166, 1
          %s1298 = smul.addr %s1297, 16
          %s1299 = scalar_lea.vmem [#allocation5], %s1298
          %1300 = dma.done %s1296, 256
        $region60: #{tpu_custom_call.1} parent=55 // pred_fallthru
          _
      $region56: #{tpu_custom_call.1} parent=5 // pred_fallthru
        _
    $region6: #{tpu_custom_call.1} parent=1 // loop_footer
      %s20 = sadd.s32 1, %s16
    $region7: #{tpu_custom_call.1} parent=1 // loop_footer_branch
      %15 = sbr.rel target = $region3
    $region8: #{tpu_custom_call.1} parent=1 // loop_exit
      _
    %1301 = vsyncpa [#allocation3], 1
    %s1302 = scalar_lea.sflag [#allocation3], 1
    %1303 = vsyncpa %s1302, 1
    %1304 = vsyncpa [#allocation4], 1
    %s1305 = scalar_lea.sflag [#allocation4], 1
    %1306 = vsyncpa %s1305, 1

</llo_original>
